<compile_context>
chip_gen: v7x
topology: tpu7x:2x2x1
jax: 0.10.0
libtpu: 0.0.40
codegen_flags: <defaults>
</compile_context>

<pallas_src>
import functools

import jax
import jax.numpy as jnp
from jax import lax
from jax.experimental import pallas as pl
from jax.experimental.pallas import tpu as pltpu


def _round_up(v, m):
    return (v + m - 1) // m * m


def _const_spec(shape):
    """Whole-array block, constant index map -> DMA'd once, stays VMEM-resident."""
    nd = len(shape)
    return pl.BlockSpec(shape, lambda i, _nd=nd: (0,) * _nd)


# ---------------------------------------------------------------------------
# Fused GnBlock kernel
# ---------------------------------------------------------------------------

def _gn_block_kernel(
    # VMEM-resident inputs (constant index map)
    xs_h_ref, xr_h_ref, e_h_ref, x_ref, a_node_ref, b_nn_ref,
    w1s_ref, w1r_ref, w1e_ref, b1e_ref, w2e_ref, b2e_ref,
    w1x_ref, w1a_ref, b1n_ref, w2n_ref, b2n_ref,
    # streamed per-edge-row tiles (auto double-buffered over the 1-D grid)
    xs_ref, xr_ref, e_ref, d_ref, rt_ref,
    # outputs
    e_out_ref, x_out_ref,
    # VMEM scratch (persists across grid steps)
    bxw_pad, x_w1x, agg_acc,
):
    i = pl.program_id(0)
    te = e_out_ref.shape[0]                  # edge-row tile size (static)
    n_pad = b_nn_ref.shape[0]                # padded node count (static)
    bp = bxw_pad.shape[0] - te               # zero tail of bxw_pad starts here

    # -- step 0: head precompute (overlaps tile-1 DMA) --------------------------
    @pl.when(i == 0)
    def _():
        # xw for edge rows 0..N-1 (the only rows B touches): cat([x_s,x_r,e]) @ W1
        xw_h = (jnp.dot(xs_h_ref[...], w1s_ref[...], preferred_element_type=jnp.float32)
                + jnp.dot(xr_h_ref[...], w1r_ref[...], preferred_element_type=jnp.float32)
                + jnp.dot(e_h_ref[...], w1e_ref[...], preferred_element_type=jnp.float32))
        # off-diagonal part of A_e, applied once: B @ xw[:N]  (padded with a zero
        # tail so every tile can take an aligned slice, see below)
        bxw_pad[...] = jnp.zeros_like(bxw_pad)
        bxw_pad[0:n_pad, :] = jnp.dot(b_nn_ref[...], xw_h.astype(jnp.bfloat16),
                                      preferred_element_type=jnp.float32)
        # e'-independent NodeBlock matmul hoisted off the serial tail
        x_w1x[...] = jnp.dot(x_ref[...].astype(jnp.bfloat16), w1x_ref[...],
                             preferred_element_type=jnp.float32)
        agg_acc[...] = jnp.zeros_like(agg_acc)

    # -- EdgeBlock on this tile of edge rows ------------------------------------
    xw_t = (jnp.dot(xs_ref[...], w1s_ref[...], preferred_element_type=jnp.float32)
            + jnp.dot(xr_ref[...], w1r_ref[...], preferred_element_type=jnp.float32)
            + jnp.dot(e_ref[...].astype(jnp.bfloat16), w1e_ref[...],
                      preferred_element_type=jnp.float32))

    # A_e = diag(d) + B  ->  h = d * xw + pad(B @ xw[:N]) + b1
    # Rows past the [0, N) block read from the all-zero tail of bxw_pad.
    row0 = i * te
    start = pl.multiple_of(jnp.minimum(row0, bp), 16)
    h = d_ref[...] * xw_t + bxw_pad[pl.ds(start, te), :] + b1e_ref[...]
    h = jnp.maximum(h, 0.0)
    e_new = jnp.dot(h.astype(jnp.bfloat16), w2e_ref[...],
                    preferred_element_type=jnp.float32) + b2e_ref[...]

    e_out_ref[...] = e_ref[...] + e_new                      # fused residual (f32 e)

    # scatter_add(e', receivers) folded in incrementally: agg += R[:, tile] @ e'
    # (padded edge rows have all-zero R^T rows, so they never contaminate agg)
    agg_acc[...] += lax.dot_general(
        rt_ref[...], e_new.astype(jnp.bfloat16),
        dimension_numbers=(((0,), (0,)), ((), ())),
        preferred_element_type=jnp.float32)

    # -- last step: NodeBlock + fused residual ----------------------------------
    # TODO(synk): v7x megacore - split the edge axis into a 'parallel' outer axis
    #             with per-core partial agg accumulators reduced here.
    @pl.when(i == pl.num_programs(0) - 1)
    def _():
        xw_n = x_w1x[...] + jnp.dot(agg_acc[...].astype(jnp.bfloat16), w1a_ref[...],
                                    preferred_element_type=jnp.float32)
        h_n = jnp.dot(a_node_ref[...], xw_n.astype(jnp.bfloat16),
                      preferred_element_type=jnp.float32) + b1n_ref[...]
        h_n = jnp.maximum(h_n, 0.0)
        x_new = jnp.dot(h_n.astype(jnp.bfloat16), w2n_ref[...],
                        preferred_element_type=jnp.float32) + b2n_ref[...]
        x_out_ref[...] = x_ref[...] + x_new


# ---------------------------------------------------------------------------
# Plain-JAX glue: normalized adjacency / incidence construction
# ---------------------------------------------------------------------------

def gcn_norm_dense(edge_index, num_nodes):
    """Dense D^-1/2 (A + I) D^-1/2 exactly as torch_geometric gcn_norm builds it."""
    src, dst = edge_index[0], edge_index[1]
    loop = jnp.arange(num_nodes, dtype=src.dtype)
    src = jnp.concatenate([src, loop])
    dst = jnp.concatenate([dst, loop])
    w = jnp.ones(src.shape[0], jnp.float32)
    deg = jnp.zeros((num_nodes,), jnp.float32).at[dst].add(w)
    dinv = jnp.where(deg > 0, jax.lax.rsqrt(jnp.maximum(deg, 1e-30)), 0.0)
    norm = dinv[src] * w * dinv[dst]
    return jnp.zeros((num_nodes, num_nodes), jnp.float32).at[dst, src].add(norm)


def edge_gcn_norm_parts(edge_index, num_nodes, num_edges):
    """EdgeBlock gcn_norm over E 'nodes', decomposed as A_e = diag(d) + B.

    edge_index holds node ids (< N), so all off-diagonal entries of A_e live in
    the top-left [N, N] block B; every row only adds its self-loop 1/deg on the
    diagonal (rows >= N have deg == 1)."""
    src, dst = edge_index[0], edge_index[1]
    deg = jnp.ones((num_edges,), jnp.float32).at[dst].add(1.0)   # self-loop + in-edges
    dinv = jax.lax.rsqrt(deg)
    d = 1.0 / deg                                                # dinv[i]^2 (self-loop)
    b = jnp.zeros((num_nodes, num_nodes), jnp.float32).at[dst, src].add(
        dinv[src] * dinv[dst])
    return d, b


def receiver_incidence(receivers, num_nodes, num_edges):
    """R[n, e] = 1 iff receivers[e] == n, so scatter_add(e', receivers) == R @ e'."""
    return jnp.zeros((num_nodes, num_edges), jnp.float32).at[
        receivers, jnp.arange(num_edges)].add(1.0)


# ---------------------------------------------------------------------------
# Parameters (deterministic synthetic init; shapes follow build_gcn's __init__)
# ---------------------------------------------------------------------------

def init_gcn_params(key, in_size, hidden, out_size):
    k1, k2, k3, k4 = jax.random.split(key, 4)
    return dict(
        w1=jax.random.normal(k1, (in_size, hidden), jnp.float32) / jnp.sqrt(in_size),
        b1=jax.random.normal(k2, (1, hidden), jnp.float32) * 0.01,
        w2=jax.random.normal(k3, (hidden, out_size), jnp.float32) / jnp.sqrt(hidden),
        b2=jax.random.normal(k4, (1, out_size), jnp.float32) * 0.01,
    )


def init_gn_block_params(key, hidden_size):
    k_eb, k_nb = jax.random.split(key)
    return dict(
        eb=init_gcn_params(k_eb, 3 * hidden_size, hidden_size, hidden_size),
        nb=init_gcn_params(k_nb, 2 * hidden_size, hidden_size, hidden_size),
    )


# ---------------------------------------------------------------------------
# GnBlock forward (one fused pallas_call)
# ---------------------------------------------------------------------------

def gn_block_forward(params, x, edge_attr, edge_index, *, edge_tile=1024):
    n, hdim = x.shape
    e = edge_attr.shape[0]
    assert e >= n, "EdgeBlock GCN uses edge rows as nodes; requires E >= N"
    senders, receivers = edge_index[0], edge_index[1]
    n_pad = _round_up(n, 8)

    # ---- generation-aware VMEM budget and edge-row tile selection -------------
    try:
        vmem_cap = int(pltpu.get_tpu_info().vmem_capacity_bytes)   # 128 MiB v5e/v6e, 64 MiB v7x
    except Exception:
        vmem_cap = 64 * 2**20
    # streamed bytes per edge row (2 pipeline buffers, inputs + e_out tile)
    per_row = 2 * (2 * hdim * 2 + hdim * 4 + 4 + n * 2) + 2 * hdim * 4
    te = min(int(edge_tile), max((vmem_cap // 3) // max(per_row, 1), 16))
    te = _round_up(min(te, _round_up(e, 16)), 16)
    ep = _round_up(e, te)
    n_tiles = ep // te
    bp = _round_up(n_pad, te)                     # rows of bxw scratch before zero tail

    # ---- glue: gathers + A_e decomposition + A_n / R (outside the hot path) ---
    # TODO(synk): gather x[senders]/x[receivers] in-kernel via scalar-prefetched
    #             indices (PrefetchScalarGridSpec) to drop the [E,H] intermediates,
    #             and a CSR path for B / R on graphs where dense [N,N] is too big.
    xs_f = jnp.take(x, senders, axis=0)           # [E, H]
    xr_f = jnp.take(x, receivers, axis=0)
    d_e, b_nn = edge_gcn_norm_parts(edge_index, n, e)     # A_e = diag(d) + B
    a_node = gcn_norm_dense(edge_index, n).astype(jnp.bfloat16)

    def pad_rows(a, rows):
        return jnp.pad(a, ((0, rows - a.shape[0]),) + ((0, 0),) * (a.ndim - 1))

    # streamed per-edge-row operands (zero-padded to ep rows; pad rows are inert:
    # their R^T rows are zero and padded e_out rows are sliced off afterwards)
    xs_s = pad_rows(xs_f, ep).astype(jnp.bfloat16)
    xr_s = pad_rows(xr_f, ep).astype(jnp.bfloat16)
    e_s = pad_rows(edge_attr, ep)                                   # f32 (exact residual)
    d_s = pad_rows(d_e, ep).reshape(ep, 1)                          # A_e diagonal
    rt_s = (jnp.zeros((ep, n), jnp.float32)
            .at[jnp.arange(e), receivers].set(1.0).astype(jnp.bfloat16))   # R^T rows

    # VMEM-resident small operands
    b_pad = (jnp.zeros((n_pad, n_pad), jnp.float32)
             .at[:n, :n].set(b_nn).astype(jnp.bfloat16))            # [N,N] block of A_e
    xs_h = pad_rows(xs_f[:n], n_pad).astype(jnp.bfloat16)           # head edge rows 0..N-1
    xr_h = pad_rows(xr_f[:n], n_pad).astype(jnp.bfloat16)
    e_h = pad_rows(edge_attr[:n], n_pad).astype(jnp.bfloat16)

    # split W1 by concat block (kills the [E,3H]/[N,2H] concatenations), cast bf16
    pe, pn = params["eb"], params["nb"]
    w1s, w1r, w1e = (w.astype(jnp.bfloat16) for w in jnp.split(pe["w1"], 3, axis=0))
    w1x, w1a = (w.astype(jnp.bfloat16) for w in jnp.split(pn["w1"], 2, axis=0))
    w2e = pe["w2"].astype(jnp.bfloat16)
    w2n = pn["w2"].astype(jnp.bfloat16)

    const_inputs = (xs_h, xr_h, e_h, x, a_node, b_pad,
                    w1s, w1r, w1e, pe["b1"], w2e, pe["b2"],
                    w1x, w1a, pn["b1"], w2n, pn["b2"])
    stream_inputs = (xs_s, xr_s, e_s, d_s, rt_s)

    in_specs = [_const_spec(v.shape) for v in const_inputs]
    in_specs += [
        pl.BlockSpec((te, hdim), lambda i: (i, 0)),     # x[senders]   (bf16)
        pl.BlockSpec((te, hdim), lambda i: (i, 0)),     # x[receivers] (bf16)
        pl.BlockSpec((te, hdim), lambda i: (i, 0)),     # edge_attr    (f32)
        pl.BlockSpec((te, 1), lambda i: (i, 0)),        # d (A_e diagonal)
        pl.BlockSpec((te, n), lambda i: (i, 0)),        # R^T rows
    ]

    # TODO(synk): lane-dense outputs - with H=32 these tiles store via masked
    #             vst.msk; pack e'/x' into a >=128-lane slab to free the vst slot.
    out_specs = [pl.BlockSpec((te, hdim), lambda i: (i, 0)),   # e_out row tiles
                 pl.BlockSpec((n, hdim), lambda i: (0, 0))]    # x_out (written last step)
    out_shape = [jax.ShapeDtypeStruct((ep, hdim), jnp.float32),
                 jax.ShapeDtypeStruct((n, hdim), jnp.float32)]

    scratch = [pltpu.VMEM((bp + te, hdim), jnp.float32),       # pad(B @ xw[:N]) + zero tail
               pltpu.VMEM((n, hdim), jnp.float32),             # x @ W1x (hoisted)
               pltpu.VMEM((n, hdim), jnp.float32)]             # agg accumulator

    # ---- cost / VMEM bookkeeping ----------------------------------------------
    # TODO(synk): with hidden=32 every matmul uses 32 of 128/256 MXU columns;
    #             batch several graphs/blocks along the output dim to widen N.
    flops = 2 * (ep * 3 * hdim * hdim          # per-tile xw
                 + ep * hdim * hdim            # e' @ W2
                 + ep * n * hdim               # agg accumulation
                 + n_pad * 3 * hdim * hdim     # head xw
                 + n_pad * n_pad * hdim        # B @ xw[:N]
                 + 3 * n * hdim * hdim         # x@W1x, agg@W1a, W2n
                 + n * n * hdim)               # A_n matmul
    bytes_accessed = (ep * hdim * (2 + 2 + 4) + ep * (4 + 2 * n)
                      + 3 * n_pad * hdim * 2 + n * hdim * 4
                      + (n * n + n_pad * n_pad) * 2
                      + 8 * hdim * hdim * 2
                      + (ep + n) * hdim * 4)

    resident_bytes = (3 * n_pad * hdim * 2 + n * hdim * 4
                      + (n * n + n_pad * n_pad) * 2
                      + 8 * hdim * hdim * 2 + 4 * hdim * 4
                      + n * hdim * 4                               # x_out block
                      + (bp + te) * hdim * 4 + 2 * n * hdim * 4)   # scratch
    vmem_need = per_row * te + resident_bytes
    vmem_limit = int(min(max(2 * vmem_need, 16 * 2**20), int(0.75 * vmem_cap)))

    e_out_p, x_out = pl.pallas_call(
        _gn_block_kernel,
        grid=(n_tiles,),
        in_specs=in_specs,
        out_specs=out_specs,
        out_shape=out_shape,
        scratch_shapes=scratch,
        compiler_params=pltpu.CompilerParams(
            # sequential axis: scratch carry (agg) + step-0/finalize structure
            dimension_semantics=("arbitrary",),
            vmem_limit_bytes=vmem_limit),
        cost_estimate=pl.CostEstimate(flops=int(flops), transcendentals=0,
                                      bytes_accessed=int(bytes_accessed)),
    )(*const_inputs, *stream_inputs)

    return x_out, e_out_p[:e], edge_index


# ---------------------------------------------------------------------------
# Pure-JAX f32 reference (same semantics) for a correctness check
# ---------------------------------------------------------------------------

def gn_block_reference(params, x, edge_attr, edge_index):
    n = x.shape[0]
    e = edge_attr.shape[0]
    s, rcv = edge_index[0], edge_index[1]

    def gcn(feat, a_hat, p):
        h = jnp.maximum(a_hat @ (feat @ p["w1"]) + p["b1"], 0.0)
        return h @ p["w2"] + p["b2"]

    e_new = gcn(jnp.concatenate([x[s], x[rcv], edge_attr], axis=1),
                gcn_norm_dense(edge_index, e), params["eb"])
    agg = receiver_incidence(rcv, n, e) @ e_new
    x_new = gcn(jnp.concatenate([x, agg], axis=1),
                gcn_norm_dense(edge_index, n), params["nb"])
    return x + x_new, edge_attr + e_new


# ---------------------------------------------------------------------------

if __name__ == "__main__":
    hidden_size = 32
    num_nodes = 16
    num_edges = 48          # E >= N, required by the edge-block GCN semantics

    key = jax.random.PRNGKey(0)
    k_param, k_x, k_e, k_s, k_r = jax.random.split(key, 5)

    params = init_gn_block_params(k_param, hidden_size)
    x = jax.random.normal(k_x, (num_nodes, hidden_size), jnp.float32)
    edge_attr = jax.random.normal(k_e, (num_edges, hidden_size), jnp.float32)
    senders = jax.random.randint(k_s, (num_edges,), 0, num_nodes, jnp.int32)
    receivers = jax.random.randint(k_r, (num_edges,), 0, num_nodes, jnp.int32)
    edge_index = jnp.stack([senders, receivers], axis=0)        # [2, E]

    # edge_tile=16 -> 3-step grid at this toy size (exercises the streamed
    # pipeline, the step-0 head branch and the incremental agg carry);
    # realistic meshes use the default 1024-row slabs (budget-clamped).
    fwd = jax.jit(functools.partial(gn_block_forward, edge_tile=16))
    x_out, e_out, _ = fwd(params, x, edge_attr, edge_index)
    jax.block_until_ready((x_out, e_out))

    assert x_out.shape == (num_nodes, hidden_size)
    assert e_out.shape == (num_edges, hidden_size)
    assert jnp.all(jnp.isfinite(x_out)) and jnp.all(jnp.isfinite(e_out))

    # loose tolerance: matmuls run bf16 on the MXU (f32 accumulation)
    x_expect, e_expect = gn_block_reference(params, x, edge_attr, edge_index)
    assert jnp.allclose(x_out, x_expect, rtol=0.1, atol=0.25), "x mismatch"
    assert jnp.allclose(e_out, e_expect, rtol=0.1, atol=0.25), "edge_attr mismatch"

    print("KERNEL_OK")
</pallas_src>

<mosaic_0001>
module attributes {stable_mosaic.version = 11 : i64} {
  func.func private @main(%arg0: i32) attributes {dimension_semantics = [#tpu.dimension_semantics<core_parallel>], iteration_bounds = array<i64: 2>, tpu.core_type = #tpu.core_type<sc_scalar_subcore>, window_params = []} {
    return
  }
}

module attributes {stable_mosaic.version = 11 : i64} {
  func.func private @main(%arg0: i32) attributes {dimension_semantics = [#tpu.dimension_semantics<core_parallel>], iteration_bounds = array<i64: 2>, tpu.core_type = #tpu.core_type<sc_scalar_subcore>, window_params = []} {
    return
  }
}

module attributes {stable_mosaic.version = 11 : i64} {
  func.func @_gn_block_kernel(%arg0: i32, %arg1: memref<16x32xbf16, #tpu.memory_space<vmem>>, %arg2: memref<16x32xbf16, #tpu.memory_space<vmem>>, %arg3: memref<16x32xbf16, #tpu.memory_space<vmem>>, %arg4: memref<16x32xf32, #tpu.memory_space<vmem>>, %arg5: memref<16x16xbf16, #tpu.memory_space<vmem>>, %arg6: memref<16x16xbf16, #tpu.memory_space<vmem>>, %arg7: memref<32x32xbf16, #tpu.memory_space<vmem>>, %arg8: memref<32x32xbf16, #tpu.memory_space<vmem>>, %arg9: memref<32x32xbf16, #tpu.memory_space<vmem>>, %arg10: memref<1x32xf32, #tpu.memory_space<vmem>>, %arg11: memref<32x32xbf16, #tpu.memory_space<vmem>>, %arg12: memref<1x32xf32, #tpu.memory_space<vmem>>, %arg13: memref<32x32xbf16, #tpu.memory_space<vmem>>, %arg14: memref<32x32xbf16, #tpu.memory_space<vmem>>, %arg15: memref<1x32xf32, #tpu.memory_space<vmem>>, %arg16: memref<32x32xbf16, #tpu.memory_space<vmem>>, %arg17: memref<1x32xf32, #tpu.memory_space<vmem>>, %arg18: memref<16x32xbf16, #tpu.memory_space<vmem>>, %arg19: memref<16x32xbf16, #tpu.memory_space<vmem>>, %arg20: memref<16x32xf32, #tpu.memory_space<vmem>>, %arg21: memref<16x1xf32, #tpu.memory_space<vmem>>, %arg22: memref<16x16xbf16, #tpu.memory_space<vmem>>, %arg23: memref<16x32xf32, #tpu.memory_space<vmem>>, %arg24: memref<16x32xf32, #tpu.memory_space<vmem>>, %arg25: memref<32x32xf32, #tpu.memory_space<vmem>>, %arg26: memref<16x32xf32, #tpu.memory_space<vmem>>, %arg27: memref<16x32xf32, #tpu.memory_space<vmem>>) attributes {dimension_semantics = [#tpu.dimension_semantics<arbitrary>], iteration_bounds = array<i64: 3>, scalar_prefetch = 0 : i64, scratch_operands = 3 : i64, tpu.core_type = #tpu.core_type<tc>, window_params = [{pipeline_mode = #tpu.pipeline_mode<synchronous>, transform_indices = @transform_0, window_bounds = array<i64: 16, 32>}, {pipeline_mode = #tpu.pipeline_mode<synchronous>, transform_indices = @transform_1, window_bounds = array<i64: 16, 32>}, {pipeline_mode = #tpu.pipeline_mode<synchronous>, transform_indices = @transform_2, window_bounds = array<i64: 16, 32>}, {pipeline_mode = #tpu.pipeline_mode<synchronous>, transform_indices = @transform_3, window_bounds = array<i64: 16, 32>}, {pipeline_mode = #tpu.pipeline_mode<synchronous>, transform_indices = @transform_4, window_bounds = array<i64: 16, 16>}, {pipeline_mode = #tpu.pipeline_mode<synchronous>, transform_indices = @transform_5, window_bounds = array<i64: 16, 16>}, {pipeline_mode = #tpu.pipeline_mode<synchronous>, transform_indices = @transform_6, window_bounds = array<i64: 32, 32>}, {pipeline_mode = #tpu.pipeline_mode<synchronous>, transform_indices = @transform_7, window_bounds = array<i64: 32, 32>}, {pipeline_mode = #tpu.pipeline_mode<synchronous>, transform_indices = @transform_8, window_bounds = array<i64: 32, 32>}, {pipeline_mode = #tpu.pipeline_mode<synchronous>, transform_indices = @transform_9, window_bounds = array<i64: 1, 32>}, {pipeline_mode = #tpu.pipeline_mode<synchronous>, transform_indices = @transform_10, window_bounds = array<i64: 32, 32>}, {pipeline_mode = #tpu.pipeline_mode<synchronous>, transform_indices = @transform_11, window_bounds = array<i64: 1, 32>}, {pipeline_mode = #tpu.pipeline_mode<synchronous>, transform_indices = @transform_12, window_bounds = array<i64: 32, 32>}, {pipeline_mode = #tpu.pipeline_mode<synchronous>, transform_indices = @transform_13, window_bounds = array<i64: 32, 32>}, {pipeline_mode = #tpu.pipeline_mode<synchronous>, transform_indices = @transform_14, window_bounds = array<i64: 1, 32>}, {pipeline_mode = #tpu.pipeline_mode<synchronous>, transform_indices = @transform_15, window_bounds = array<i64: 32, 32>}, {pipeline_mode = #tpu.pipeline_mode<synchronous>, transform_indices = @transform_16, window_bounds = array<i64: 1, 32>}, {transform_indices = @transform_17, window_bounds = array<i64: 16, 32>}, {transform_indices = @transform_18, window_bounds = array<i64: 16, 32>}, {transform_indices = @transform_19, window_bounds = array<i64: 16, 32>}, {transform_indices = @transform_20, window_bounds = array<i64: 16, 1>}, {transform_indices = @transform_21, window_bounds = array<i64: 16, 16>}, {transform_indices = @transform_22, window_bounds = array<i64: 16, 32>}, {pipeline_mode = #tpu.pipeline_mode<synchronous>, transform_indices = @transform_23, window_bounds = array<i64: 16, 32>}]} {
    %c0_i32 = arith.constant 0 : i32
    %0 = arith.cmpi eq, %arg0, %c0_i32 : i32
    %1 = arith.extui %0 : i1 to i32
    %c0_i32_0 = arith.constant 0 : i32
    %2 = arith.cmpi ne, %1, %c0_i32_0 : i32
    scf.if %2 {
      %c0_38 = arith.constant 0 : index
      %c0_39 = arith.constant 0 : index
      %47 = vector.load %arg1[%c0_38, %c0_39] : memref<16x32xbf16, #tpu.memory_space<vmem>>, vector<16x32xbf16>
      %c0_40 = arith.constant 0 : index
      %c0_41 = arith.constant 0 : index
      %48 = vector.load %arg7[%c0_40, %c0_41] : memref<32x32xbf16, #tpu.memory_space<vmem>>, vector<32x32xbf16>
      %cst_42 = arith.constant dense<0.000000e+00> : vector<16x32xf32>
      %49 = tpu.matmul %47, %48, %cst_42 {dimension_numbers = #tpu.dot_dimension_numbers<[1], [0], [0], [1], [0, 0, 1, 1], [], []>} : vector<16x32xbf16>, vector<32x32xbf16>, vector<16x32xf32> -> vector<16x32xf32>
      %c0_43 = arith.constant 0 : index
      %c0_44 = arith.constant 0 : index
      %50 = vector.load %arg2[%c0_43, %c0_44] : memref<16x32xbf16, #tpu.memory_space<vmem>>, vector<16x32xbf16>
      %c0_45 = arith.constant 0 : index
      %c0_46 = arith.constant 0 : index
      %51 = vector.load %arg8[%c0_45, %c0_46] : memref<32x32xbf16, #tpu.memory_space<vmem>>, vector<32x32xbf16>
      %cst_47 = arith.constant dense<0.000000e+00> : vector<16x32xf32>
      %52 = tpu.matmul %50, %51, %cst_47 {dimension_numbers = #tpu.dot_dimension_numbers<[1], [0], [0], [1], [0, 0, 1, 1], [], []>} : vector<16x32xbf16>, vector<32x32xbf16>, vector<16x32xf32> -> vector<16x32xf32>
      %53 = arith.addf %49, %52 : vector<16x32xf32>
      %c0_48 = arith.constant 0 : index
      %c0_49 = arith.constant 0 : index
      %54 = vector.load %arg3[%c0_48, %c0_49] : memref<16x32xbf16, #tpu.memory_space<vmem>>, vector<16x32xbf16>
      %c0_50 = arith.constant 0 : index
      %c0_51 = arith.constant 0 : index
      %55 = vector.load %arg9[%c0_50, %c0_51] : memref<32x32xbf16, #tpu.memory_space<vmem>>, vector<32x32xbf16>
      %cst_52 = arith.constant dense<0.000000e+00> : vector<16x32xf32>
      %56 = tpu.matmul %54, %55, %cst_52 {dimension_numbers = #tpu.dot_dimension_numbers<[1], [0], [0], [1], [0, 0, 1, 1], [], []>} : vector<16x32xbf16>, vector<32x32xbf16>, vector<16x32xf32> -> vector<16x32xf32>
      %57 = arith.addf %53, %56 : vector<16x32xf32>
      %cst_53 = arith.constant 0.000000e+00 : f32
      %58 = vector.broadcast %cst_53 : f32 to vector<32x32xf32>
      %c0_54 = arith.constant 0 : index
      %c0_55 = arith.constant 0 : index
      %59 = vector.load %arg25[%c0_54, %c0_55] : memref<32x32xf32, #tpu.memory_space<vmem>>, vector<32x32xf32>
      tpu.vector_store %arg25[%c0_54, %c0_55], %58 {strides = array<i32>} : memref<32x32xf32, #tpu.memory_space<vmem>>, vector<32x32xf32>,
      %c0_56 = arith.constant 0 : index
      %c0_57 = arith.constant 0 : index
      %60 = vector.load %arg6[%c0_56, %c0_57] : memref<16x16xbf16, #tpu.memory_space<vmem>>, vector<16x16xbf16>
      %61 = arith.truncf %57 : vector<16x32xf32> to vector<16x32xbf16>
      %cst_58 = arith.constant dense<0.000000e+00> : vector<16x32xf32>
      %62 = tpu.matmul %60, %61, %cst_58 {dimension_numbers = #tpu.dot_dimension_numbers<[1], [0], [0], [1], [0, 0, 1, 1], [], []>} : vector<16x16xbf16>, vector<16x32xbf16>, vector<16x32xf32> -> vector<16x32xf32>
      %c0_59 = arith.constant 0 : index
      %c0_60 = arith.constant 0 : index
      %63 = vector.load %arg25[%c0_59, %c0_60] : memref<32x32xf32, #tpu.memory_space<vmem>>, vector<16x32xf32>
      tpu.vector_store %arg25[%c0_59, %c0_60], %62 {strides = array<i32>} : memref<32x32xf32, #tpu.memory_space<vmem>>, vector<16x32xf32>,
      %c0_61 = arith.constant 0 : index
      %c0_62 = arith.constant 0 : index
      %64 = vector.load %arg4[%c0_61, %c0_62] : memref<16x32xf32, #tpu.memory_space<vmem>>, vector<16x32xf32>
      %65 = arith.truncf %64 : vector<16x32xf32> to vector<16x32xbf16>
      %c0_63 = arith.constant 0 : index
      %c0_64 = arith.constant 0 : index
      %66 = vector.load %arg13[%c0_63, %c0_64] : memref<32x32xbf16, #tpu.memory_space<vmem>>, vector<32x32xbf16>
      %cst_65 = arith.constant dense<0.000000e+00> : vector<16x32xf32>
      %67 = tpu.matmul %65, %66, %cst_65 {dimension_numbers = #tpu.dot_dimension_numbers<[1], [0], [0], [1], [0, 0, 1, 1], [], []>} : vector<16x32xbf16>, vector<32x32xbf16>, vector<16x32xf32> -> vector<16x32xf32>
      %c0_66 = arith.constant 0 : index
      %c0_67 = arith.constant 0 : index
      %68 = vector.load %arg26[%c0_66, %c0_67] : memref<16x32xf32, #tpu.memory_space<vmem>>, vector<16x32xf32>
      tpu.vector_store %arg26[%c0_66, %c0_67], %67 {strides = array<i32>} : memref<16x32xf32, #tpu.memory_space<vmem>>, vector<16x32xf32>,
      %cst_68 = arith.constant 0.000000e+00 : f32
      %69 = vector.broadcast %cst_68 : f32 to vector<16x32xf32>
      %c0_69 = arith.constant 0 : index
      %c0_70 = arith.constant 0 : index
      %70 = vector.load %arg27[%c0_69, %c0_70] : memref<16x32xf32, #tpu.memory_space<vmem>>, vector<16x32xf32>
      tpu.vector_store %arg27[%c0_69, %c0_70], %69 {strides = array<i32>} : memref<16x32xf32, #tpu.memory_space<vmem>>, vector<16x32xf32>,
    } else {
    }
    %c0 = arith.constant 0 : index
    %c0_1 = arith.constant 0 : index
    %3 = vector.load %arg18[%c0, %c0_1] : memref<16x32xbf16, #tpu.memory_space<vmem>>, vector<16x32xbf16>
    %c0_2 = arith.constant 0 : index
    %c0_3 = arith.constant 0 : index
    %4 = vector.load %arg7[%c0_2, %c0_3] : memref<32x32xbf16, #tpu.memory_space<vmem>>, vector<32x32xbf16>
    %cst = arith.constant dense<0.000000e+00> : vector<16x32xf32>
    %5 = tpu.matmul %3, %4, %cst {dimension_numbers = #tpu.dot_dimension_numbers<[1], [0], [0], [1], [0, 0, 1, 1], [], []>} : vector<16x32xbf16>, vector<32x32xbf16>, vector<16x32xf32> -> vector<16x32xf32>
    %c0_4 = arith.constant 0 : index
    %c0_5 = arith.constant 0 : index
    %6 = vector.load %arg19[%c0_4, %c0_5] : memref<16x32xbf16, #tpu.memory_space<vmem>>, vector<16x32xbf16>
    %c0_6 = arith.constant 0 : index
    %c0_7 = arith.constant 0 : index
    %7 = vector.load %arg8[%c0_6, %c0_7] : memref<32x32xbf16, #tpu.memory_space<vmem>>, vector<32x32xbf16>
    %cst_8 = arith.constant dense<0.000000e+00> : vector<16x32xf32>
    %8 = tpu.matmul %6, %7, %cst_8 {dimension_numbers = #tpu.dot_dimension_numbers<[1], [0], [0], [1], [0, 0, 1, 1], [], []>} : vector<16x32xbf16>, vector<32x32xbf16>, vector<16x32xf32> -> vector<16x32xf32>
    %9 = arith.addf %5, %8 : vector<16x32xf32>
    %c0_9 = arith.constant 0 : index
    %c0_10 = arith.constant 0 : index
    %10 = vector.load %arg20[%c0_9, %c0_10] : memref<16x32xf32, #tpu.memory_space<vmem>>, vector<16x32xf32>
    %11 = arith.truncf %10 : vector<16x32xf32> to vector<16x32xbf16>
    %c0_11 = arith.constant 0 : index
    %c0_12 = arith.constant 0 : index
    %12 = vector.load %arg9[%c0_11, %c0_12] : memref<32x32xbf16, #tpu.memory_space<vmem>>, vector<32x32xbf16>
    %cst_13 = arith.constant dense<0.000000e+00> : vector<16x32xf32>
    %13 = tpu.matmul %11, %12, %cst_13 {dimension_numbers = #tpu.dot_dimension_numbers<[1], [0], [0], [1], [0, 0, 1, 1], [], []>} : vector<16x32xbf16>, vector<32x32xbf16>, vector<16x32xf32> -> vector<16x32xf32>
    %14 = arith.addf %9, %13 : vector<16x32xf32>
    %c16_i32 = arith.constant 16 : i32
    %15 = arith.muli %arg0, %c16_i32 : i32
    %c16_i32_14 = arith.constant 16 : i32
    %16 = arith.minsi %15, %c16_i32_14 : i32
    %17 = tpu.assume_multiple %16, 16 : i32
    %c0_15 = arith.constant 0 : index
    %c0_16 = arith.constant 0 : index
    %18 = vector.load %arg21[%c0_15, %c0_16] : memref<16x1xf32, #tpu.memory_space<vmem>>, vector<16x1xf32>
    %19 = vector.broadcast %18 : vector<16x1xf32> to vector<16x32xf32>
    %20 = arith.mulf %19, %14 : vector<16x32xf32>
    %21 = arith.index_cast %17 : i32 to index
    %c0_17 = arith.constant 0 : index
    %22 = vector.load %arg25[%21, %c0_17] : memref<32x32xf32, #tpu.memory_space<vmem>>, vector<16x32xf32>
    %23 = arith.addf %20, %22 : vector<16x32xf32>
    %c0_18 = arith.constant 0 : index
    %c0_19 = arith.constant 0 : index
    %24 = vector.load %arg10[%c0_18, %c0_19] : memref<1x32xf32, #tpu.memory_space<vmem>>, vector<1x32xf32>
    %25 = vector.broadcast %24 : vector<1x32xf32> to vector<16x32xf32>
    %26 = arith.addf %23, %25 : vector<16x32xf32>
    %cst_20 = arith.constant 0.000000e+00 : f32
    %27 = vector.broadcast %cst_20 : f32 to vector<16x32xf32>
    %28 = arith.maximumf %26, %27 : vector<16x32xf32>
    %29 = arith.truncf %28 : vector<16x32xf32> to vector<16x32xbf16>
    %c0_21 = arith.constant 0 : index
    %c0_22 = arith.constant 0 : index
    %30 = vector.load %arg11[%c0_21, %c0_22] : memref<32x32xbf16, #tpu.memory_space<vmem>>, vector<32x32xbf16>
    %cst_23 = arith.constant dense<0.000000e+00> : vector<16x32xf32>
    %31 = tpu.matmul %29, %30, %cst_23 {dimension_numbers = #tpu.dot_dimension_numbers<[1], [0], [0], [1], [0, 0, 1, 1], [], []>} : vector<16x32xbf16>, vector<32x32xbf16>, vector<16x32xf32> -> vector<16x32xf32>
    %c0_24 = arith.constant 0 : index
    %c0_25 = arith.constant 0 : index
    %32 = vector.load %arg12[%c0_24, %c0_25] : memref<1x32xf32, #tpu.memory_space<vmem>>, vector<1x32xf32>
    %33 = vector.broadcast %32 : vector<1x32xf32> to vector<16x32xf32>
    %34 = arith.addf %31, %33 : vector<16x32xf32>
    %c0_26 = arith.constant 0 : index
    %c0_27 = arith.constant 0 : index
    %35 = vector.load %arg20[%c0_26, %c0_27] : memref<16x32xf32, #tpu.memory_space<vmem>>, vector<16x32xf32>
    %36 = arith.addf %35, %34 : vector<16x32xf32>
    %c0_28 = arith.constant 0 : index
    %c0_29 = arith.constant 0 : index
    %37 = vector.load %arg23[%c0_28, %c0_29] : memref<16x32xf32, #tpu.memory_space<vmem>>, vector<16x32xf32>
    tpu.vector_store %arg23[%c0_28, %c0_29], %36 {strides = array<i32>} : memref<16x32xf32, #tpu.memory_space<vmem>>, vector<16x32xf32>,
    %c0_30 = arith.constant 0 : index
    %c0_31 = arith.constant 0 : index
    %38 = vector.load %arg27[%c0_30, %c0_31] : memref<16x32xf32, #tpu.memory_space<vmem>>, vector<16x32xf32>
    %c0_32 = arith.constant 0 : index
    %c0_33 = arith.constant 0 : index
    %39 = vector.load %arg22[%c0_32, %c0_33] : memref<16x16xbf16, #tpu.memory_space<vmem>>, vector<16x16xbf16>
    %40 = arith.truncf %34 : vector<16x32xf32> to vector<16x32xbf16>
    %cst_34 = arith.constant dense<0.000000e+00> : vector<16x32xf32>
    %41 = tpu.matmul %39, %40, %cst_34 {dimension_numbers = #tpu.dot_dimension_numbers<[0], [0], [1], [1], [0, 1, 1, 1], [], []>} : vector<16x16xbf16>, vector<16x32xbf16>, vector<16x32xf32> -> vector<16x32xf32>
    %42 = arith.addf %38, %41 : vector<16x32xf32>
    %c0_35 = arith.constant 0 : index
    %c0_36 = arith.constant 0 : index
    %43 = vector.load %arg27[%c0_35, %c0_36] : memref<16x32xf32, #tpu.memory_space<vmem>>, vector<16x32xf32>
    tpu.vector_store %arg27[%c0_35, %c0_36], %42 {strides = array<i32>} : memref<16x32xf32, #tpu.memory_space<vmem>>, vector<16x32xf32>,
    %c2_i32 = arith.constant 2 : i32
    %44 = arith.cmpi eq, %arg0, %c2_i32 : i32
    %45 = arith.extui %44 : i1 to i32
    %c0_i32_37 = arith.constant 0 : i32
    %46 = arith.cmpi ne, %45, %c0_i32_37 : i32
    scf.if %46 {
      %c0_38 = arith.constant 0 : index
      %c0_39 = arith.constant 0 : index
      %47 = vector.load %arg26[%c0_38, %c0_39] : memref<16x32xf32, #tpu.memory_space<vmem>>, vector<16x32xf32>
      %c0_40 = arith.constant 0 : index
      %c0_41 = arith.constant 0 : index
      %48 = vector.load %arg27[%c0_40, %c0_41] : memref<16x32xf32, #tpu.memory_space<vmem>>, vector<16x32xf32>
      %49 = arith.truncf %48 : vector<16x32xf32> to vector<16x32xbf16>
      %c0_42 = arith.constant 0 : index
      %c0_43 = arith.constant 0 : index
      %50 = vector.load %arg14[%c0_42, %c0_43] : memref<32x32xbf16, #tpu.memory_space<vmem>>, vector<32x32xbf16>
      %cst_44 = arith.constant dense<0.000000e+00> : vector<16x32xf32>
      %51 = tpu.matmul %49, %50, %cst_44 {dimension_numbers = #tpu.dot_dimension_numbers<[1], [0], [0], [1], [0, 0, 1, 1], [], []>} : vector<16x32xbf16>, vector<32x32xbf16>, vector<16x32xf32> -> vector<16x32xf32>
      %52 = arith.addf %47, %51 : vector<16x32xf32>
      %c0_45 = arith.constant 0 : index
      %c0_46 = arith.constant 0 : index
      %53 = vector.load %arg5[%c0_45, %c0_46] : memref<16x16xbf16, #tpu.memory_space<vmem>>, vector<16x16xbf16>
      %54 = arith.truncf %52 : vector<16x32xf32> to vector<16x32xbf16>
      %cst_47 = arith.constant dense<0.000000e+00> : vector<16x32xf32>
      %55 = tpu.matmul %53, %54, %cst_47 {dimension_numbers = #tpu.dot_dimension_numbers<[1], [0], [0], [1], [0, 0, 1, 1], [], []>} : vector<16x16xbf16>, vector<16x32xbf16>, vector<16x32xf32> -> vector<16x32xf32>
      %c0_48 = arith.constant 0 : index
      %c0_49 = arith.constant 0 : index
      %56 = vector.load %arg15[%c0_48, %c0_49] : memref<1x32xf32, #tpu.memory_space<vmem>>, vector<1x32xf32>
      %57 = vector.broadcast %56 : vector<1x32xf32> to vector<16x32xf32>
      %58 = arith.addf %55, %57 : vector<16x32xf32>
      %cst_50 = arith.constant 0.000000e+00 : f32
      %59 = vector.broadcast %cst_50 : f32 to vector<16x32xf32>
      %60 = arith.maximumf %58, %59 : vector<16x32xf32>
      %61 = arith.truncf %60 : vector<16x32xf32> to vector<16x32xbf16>
      %c0_51 = arith.constant 0 : index
      %c0_52 = arith.constant 0 : index
      %62 = vector.load %arg16[%c0_51, %c0_52] : memref<32x32xbf16, #tpu.memory_space<vmem>>, vector<32x32xbf16>
      %cst_53 = arith.constant dense<0.000000e+00> : vector<16x32xf32>
      %63 = tpu.matmul %61, %62, %cst_53 {dimension_numbers = #tpu.dot_dimension_numbers<[1], [0], [0], [1], [0, 0, 1, 1], [], []>} : vector<16x32xbf16>, vector<32x32xbf16>, vector<16x32xf32> -> vector<16x32xf32>
      %c0_54 = arith.constant 0 : index
      %c0_55 = arith.constant 0 : index
      %64 = vector.load %arg17[%c0_54, %c0_55] : memref<1x32xf32, #tpu.memory_space<vmem>>, vector<1x32xf32>
      %65 = vector.broadcast %64 : vector<1x32xf32> to vector<16x32xf32>
      %66 = arith.addf %63, %65 : vector<16x32xf32>
      %c0_56 = arith.constant 0 : index
      %c0_57 = arith.constant 0 : index
      %67 = vector.load %arg4[%c0_56, %c0_57] : memref<16x32xf32, #tpu.memory_space<vmem>>, vector<16x32xf32>
      %68 = arith.addf %67, %66 : vector<16x32xf32>
      %c0_58 = arith.constant 0 : index
      %c0_59 = arith.constant 0 : index
      %69 = vector.load %arg24[%c0_58, %c0_59] : memref<16x32xf32, #tpu.memory_space<vmem>>, vector<16x32xf32>
      tpu.vector_store %arg24[%c0_58, %c0_59], %68 {strides = array<i32>} : memref<16x32xf32, #tpu.memory_space<vmem>>, vector<16x32xf32>,
    } else {
    }
    return
  }
  func.func @transform_0(%arg0: i32) -> (i32, i32) {
    %c0_i32 = arith.constant 0 : i32
    %c0_i32_0 = arith.constant 0 : i32
    %c0_i32_1 = arith.constant 0 : i32
    return %c0_i32, %c0_i32_0 : i32, i32
  }
  func.func @transform_1(%arg0: i32) -> (i32, i32) {
    %c0_i32 = arith.constant 0 : i32
    %c0_i32_0 = arith.constant 0 : i32
    %c0_i32_1 = arith.constant 0 : i32
    return %c0_i32, %c0_i32_0 : i32, i32
  }
  func.func @transform_2(%arg0: i32) -> (i32, i32) {
    %c0_i32 = arith.constant 0 : i32
    %c0_i32_0 = arith.constant 0 : i32
    %c0_i32_1 = arith.constant 0 : i32
    return %c0_i32, %c0_i32_0 : i32, i32
  }
  func.func @transform_3(%arg0: i32) -> (i32, i32) {
    %c0_i32 = arith.constant 0 : i32
    %c0_i32_0 = arith.constant 0 : i32
    %c0_i32_1 = arith.constant 0 : i32
    return %c0_i32, %c0_i32_0 : i32, i32
  }
  func.func @transform_4(%arg0: i32) -> (i32, i32) {
    %c0_i32 = arith.constant 0 : i32
    %c0_i32_0 = arith.constant 0 : i32
    %c0_i32_1 = arith.constant 0 : i32
    return %c0_i32, %c0_i32_0 : i32, i32
  }
  func.func @transform_5(%arg0: i32) -> (i32, i32) {
    %c0_i32 = arith.constant 0 : i32
    %c0_i32_0 = arith.constant 0 : i32
    %c0_i32_1 = arith.constant 0 : i32
    return %c0_i32, %c0_i32_0 : i32, i32
  }
  func.func @transform_6(%arg0: i32) -> (i32, i32) {
    %c0_i32 = arith.constant 0 : i32
    %c0_i32_0 = arith.constant 0 : i32
    %c0_i32_1 = arith.constant 0 : i32
    return %c0_i32, %c0_i32_0 : i32, i32
  }
  func.func @transform_7(%arg0: i32) -> (i32, i32) {
    %c0_i32 = arith.constant 0 : i32
    %c0_i32_0 = arith.constant 0 : i32
    %c0_i32_1 = arith.constant 0 : i32
    return %c0_i32, %c0_i32_0 : i32, i32
  }
  func.func @transform_8(%arg0: i32) -> (i32, i32) {
    %c0_i32 = arith.constant 0 : i32
    %c0_i32_0 = arith.constant 0 : i32
    %c0_i32_1 = arith.constant 0 : i32
    return %c0_i32, %c0_i32_0 : i32, i32
  }
  func.func @transform_9(%arg0: i32) -> (i32, i32) {
    %c0_i32 = arith.constant 0 : i32
    %c0_i32_0 = arith.constant 0 : i32
    %c0_i32_1 = arith.constant 0 : i32
    return %c0_i32, %c0_i32_0 : i32, i32
  }
  func.func @transform_10(%arg0: i32) -> (i32, i32) {
    %c0_i32 = arith.constant 0 : i32
    %c0_i32_0 = arith.constant 0 : i32
    %c0_i32_1 = arith.constant 0 : i32
    return %c0_i32, %c0_i32_0 : i32, i32
  }
  func.func @transform_11(%arg0: i32) -> (i32, i32) {
    %c0_i32 = arith.constant 0 : i32
    %c0_i32_0 = arith.constant 0 : i32
    %c0_i32_1 = arith.constant 0 : i32
    return %c0_i32, %c0_i32_0 : i32, i32
  }
  func.func @transform_12(%arg0: i32) -> (i32, i32) {
    %c0_i32 = arith.constant 0 : i32
    %c0_i32_0 = arith.constant 0 : i32
    %c0_i32_1 = arith.constant 0 : i32
    return %c0_i32, %c0_i32_0 : i32, i32
  }
  func.func @transform_13(%arg0: i32) -> (i32, i32) {
    %c0_i32 = arith.constant 0 : i32
    %c0_i32_0 = arith.constant 0 : i32
    %c0_i32_1 = arith.constant 0 : i32
    return %c0_i32, %c0_i32_0 : i32, i32
  }
  func.func @transform_14(%arg0: i32) -> (i32, i32) {
    %c0_i32 = arith.constant 0 : i32
    %c0_i32_0 = arith.constant 0 : i32
    %c0_i32_1 = arith.constant 0 : i32
    return %c0_i32, %c0_i32_0 : i32, i32
  }
  func.func @transform_15(%arg0: i32) -> (i32, i32) {
    %c0_i32 = arith.constant 0 : i32
    %c0_i32_0 = arith.constant 0 : i32
    %c0_i32_1 = arith.constant 0 : i32
    return %c0_i32, %c0_i32_0 : i32, i32
  }
  func.func @transform_16(%arg0: i32) -> (i32, i32) {
    %c0_i32 = arith.constant 0 : i32
    %c0_i32_0 = arith.constant 0 : i32
    %c0_i32_1 = arith.constant 0 : i32
    return %c0_i32, %c0_i32_0 : i32, i32
  }
  func.func @transform_17(%arg0: i32) -> (i32, i32) {
    %c0_i32 = arith.constant 0 : i32
    %c0_i32_0 = arith.constant 0 : i32
    return %arg0, %c0_i32 : i32, i32
  }
  func.func @transform_18(%arg0: i32) -> (i32, i32) {
    %c0_i32 = arith.constant 0 : i32
    %c0_i32_0 = arith.constant 0 : i32
    return %arg0, %c0_i32 : i32, i32
  }
  func.func @transform_19(%arg0: i32) -> (i32, i32) {
    %c0_i32 = arith.constant 0 : i32
    %c0_i32_0 = arith.constant 0 : i32
    return %arg0, %c0_i32 : i32, i32
  }
  func.func @transform_20(%arg0: i32) -> (i32, i32) {
    %c0_i32 = arith.constant 0 : i32
    %c0_i32_0 = arith.constant 0 : i32
    return %arg0, %c0_i32 : i32, i32
  }
  func.func @transform_21(%arg0: i32) -> (i32, i32) {
    %c0_i32 = arith.constant 0 : i32
    %c0_i32_0 = arith.constant 0 : i32
    return %arg0, %c0_i32 : i32, i32
  }
  func.func @transform_22(%arg0: i32) -> (i32, i32) {
    %c0_i32 = arith.constant 0 : i32
    %c0_i32_0 = arith.constant 0 : i32
    return %arg0, %c0_i32 : i32, i32
  }
  func.func @transform_23(%arg0: i32) -> (i32, i32) {
    %c0_i32 = arith.constant 0 : i32
    %c0_i32_0 = arith.constant 0 : i32
    %c0_i32_1 = arith.constant 0 : i32
    return %c0_i32, %c0_i32_0 : i32, i32
  }
}

</mosaic_0001>

<llo_original>
// kernel: mul.2
$region0: #{mul.2}
  #allocation0 [shape = 's32[1]{0}', space=sflag, size = 0x4, scoped, tag = 'scoped memory for mul.2']
  %s0 = inlined_call_operand.vmem [shape: f32[48], index: 0, kind: input, shape index: {}]
  %s1 = inlined_call_operand.vmem [shape: f32[48], index: 1, kind: input, shape index: {}]
  %s2 = inlined_call_operand.vmem [shape: f32[48], index: 2, kind: output, shape index: {}]
  %v3 = vld [vmem:[%s0] sm:$0x1]
  %v4 = vld [vmem:[%s1] sm:$0x1]
  %5 = xla_tuple %v3, %v4
  %6 = xla_tuple %5
  %v7 = vmul.f32 %v3, %v4
  %8 = xla_tuple %v7
  %9 = vst [vmem:[%s2] sm:$0x1] %v7

// kernel: mul.3
$region0: #{mul.3}
  #allocation0 [shape = 's32[1]{0}', space=sflag, size = 0x4, scoped, tag = 'scoped memory for mul.3']
  %s0 = inlined_call_operand.vmem [shape: f32[64], index: 0, kind: input, shape index: {}]
  %s1 = inlined_call_operand.vmem [shape: f32[64], index: 1, kind: input, shape index: {}]
  %s2 = inlined_call_operand.vmem [shape: f32[64], index: 2, kind: output, shape index: {}]
  %v3 = vld [vmem:[%s0] sm:$0x1]
  %v4 = vld [vmem:[%s1] sm:$0x1]
  %5 = xla_tuple %v3, %v4
  %6 = xla_tuple %5
  %v7 = vmul.f32 %v3, %v4
  %8 = xla_tuple %v7
  %9 = vst [vmem:[%s2] sm:$0x1] %v7

// kernel: gn_block_forward.1
$region0: #{gn_block_forward.1}
  #allocation0 [shape = 'u32[]', space=smem, size = 0x4, offset = 0x4, fixed_abs, tag = 'smem constant byte address 0x4 - core index']
  #allocation1 [shape = 'u32[144,128]{1,0:T(1,128)}', space=vmem, size = 0x12000, scoped, tag = 'internal scratch']
  #allocation2 [shape = 'f32[32,32]{1,0:T(8,128)}', space=vmem, size = 0x4000, scoped, tag = 'scratch operand']
  #allocation3 [shape = 'f32[16,32]{1,0:T(8,128)}', space=vmem, size = 0x2000, scoped, tag = 'scratch operand']
  #allocation4 [shape = 'f32[16,32]{1,0:T(8,128)}', space=vmem, size = 0x2000, scoped, tag = 'scratch operand']
  %s0 = inlined_call_operand.vmem [shape: bf16[16,32], index: 0, kind: input, shape index: {}]
  %s1 = inlined_call_operand.vmem [shape: bf16[16,32], index: 1, kind: input, shape index: {}]
  %s2 = inlined_call_operand.vmem [shape: bf16[16,32], index: 2, kind: input, shape index: {}]
  %s3 = inlined_call_operand.vmem [shape: f32[16,32], index: 3, kind: input, shape index: {}]
  %s4 = inlined_call_operand.vmem [shape: bf16[16,16], index: 4, kind: input, shape index: {}]
  %s5 = inlined_call_operand.vmem [shape: bf16[16,16], index: 5, kind: input, shape index: {}]
  %s6 = inlined_call_operand.vmem [shape: bf16[32,32], index: 6, kind: input, shape index: {}]
  %s7 = inlined_call_operand.vmem [shape: bf16[32,32], index: 7, kind: input, shape index: {}]
  %s8 = inlined_call_operand.vmem [shape: bf16[32,32], index: 8, kind: input, shape index: {}]
  %s9 = inlined_call_operand.vmem [shape: f32[1,32], index: 9, kind: input, shape index: {}]
  %s10 = inlined_call_operand.vmem [shape: bf16[32,32], index: 10, kind: input, shape index: {}]
  %s11 = inlined_call_operand.vmem [shape: f32[1,32], index: 11, kind: input, shape index: {}]
  %s12 = inlined_call_operand.vmem [shape: bf16[32,32], index: 12, kind: input, shape index: {}]
  %s13 = inlined_call_operand.vmem [shape: bf16[32,32], index: 13, kind: input, shape index: {}]
  %s14 = inlined_call_operand.vmem [shape: f32[1,32], index: 14, kind: input, shape index: {}]
  %s15 = inlined_call_operand.vmem [shape: bf16[32,32], index: 15, kind: input, shape index: {}]
  %s16 = inlined_call_operand.vmem [shape: f32[1,32], index: 16, kind: input, shape index: {}]
  %s17 = inlined_call_operand.vmem [shape: bf16[48,32], index: 17, kind: input, shape index: {}]
  %s18 = inlined_call_operand.vmem [shape: bf16[48,32], index: 18, kind: input, shape index: {}]
  %s19 = inlined_call_operand.vmem [shape: f32[48,32], index: 19, kind: input, shape index: {}]
  %s20 = inlined_call_operand.vmem [shape: f32[48,1], index: 20, kind: input, shape index: {}]
  %s21 = inlined_call_operand.vmem [shape: bf16[48,16], index: 21, kind: input, shape index: {}]
  %s22 = inlined_call_operand.vmem [shape: f32[48,32], index: 22, kind: output, shape index: {0}]
  %s23 = inlined_call_operand.hbm [shape: f32[16,32], index: 23, kind: output, shape index: {1}]
  %24 = xla_tuple %s22, %s23
  %s25 = sld [smem:[#allocation0]]
  $region137: #{gn_block_forward.1} parent=0
    _
  %s27 = ssub.s32 1, %s25
  %s28 = scalar_select 0, %s27, %s25
  $region1: #{gn_block_forward.1} parent=0
    #allocation5 [shape = 'u8[8192]{0}', space=vmem, size = 0x2000, scoped, tag = 'output window, operand 1, single buffered']
    #allocation6 [shape = 's32[2]{0}', space=sflag, size = 0x8, scoped, tag = 'scoped memory for gn_block_forward.1']
    %29 = vsyncpa [#allocation6], 0
    loop: start=0, step=1, limit=5
    $region2: #{gn_block_forward.1} parent=1 // loop_pre_header
      _
    $region3: #{gn_block_forward.1} parent=1 // loop_header
      %s31 = sphi 0, %s35
      %p32 = scmp.ge.s32.totalorder %s31, 5
      %s39 = sphi 0, %s39
      %s41 = sphi 0, %s39
      %s42 = sphi 0, %s41
      %s56 = sphi 0, %s42
      %s60 = sphi 0, %s60
      %s62 = sphi 0, %s60
      %s63 = sphi 0, %s62
      %s77 = sphi 0, %s63
      %s81 = sphi 0, %s81
      %s83 = sphi 0, %s81
      %s84 = sphi 0, %s83
      %s98 = sphi 0, %s84
      %s102 = sphi 0, %s102
      %s104 = sphi 0, %s102
      %s105 = sphi 0, %s104
      %s119 = sphi 0, %s105
      %s123 = sphi 0, %s123
      %s125 = sphi 0, %s123
      %s126 = sphi 0, %s125
      %s140 = sphi 0, %s126
      %s144 = sphi 0, %s144
      %s146 = sphi 0, %s144
      %s147 = sphi 0, %s146
      %s161 = sphi 0, %s147
      %s165 = sphi 0, %s165
      %s167 = sphi 0, %s165
      %s168 = sphi 0, %s167
      %s182 = sphi 0, %s168
      %s186 = sphi 0, %s186
      %s188 = sphi 0, %s186
      %s189 = sphi 0, %s188
      %s203 = sphi 0, %s189
      %s207 = sphi 0, %s207
      %s209 = sphi 0, %s207
      %s210 = sphi 0, %s209
      %s224 = sphi 0, %s210
      %s228 = sphi 0, %s228
      %s230 = sphi 0, %s228
      %s231 = sphi 0, %s230
      %s245 = sphi 0, %s231
      %s249 = sphi 0, %s249
      %s251 = sphi 0, %s249
      %s252 = sphi 0, %s251
      %s266 = sphi 0, %s252
      %s270 = sphi 0, %s270
      %s272 = sphi 0, %s270
      %s273 = sphi 0, %s272
      %s287 = sphi 0, %s273
      %s291 = sphi 0, %s291
      %s293 = sphi 0, %s291
      %s294 = sphi 0, %s293
      %s308 = sphi 0, %s294
      %s312 = sphi 0, %s312
      %s314 = sphi 0, %s312
      %s315 = sphi 0, %s314
      %s329 = sphi 0, %s315
      %s333 = sphi 0, %s333
      %s335 = sphi 0, %s333
      %s336 = sphi 0, %s335
      %s350 = sphi 0, %s336
      %s354 = sphi 0, %s354
      %s356 = sphi 0, %s354
      %s357 = sphi 0, %s356
      %s371 = sphi 0, %s357
      %s375 = sphi 0, %s375
      %s377 = sphi 0, %s375
      %s378 = sphi 0, %s377
      %s392 = sphi 0, %s378
      %s398 = sphi 0, %s400
      %s401 = sphi 0, %s398
      %s402 = sphi 0, %s401
      %s418 = sphi 0, %s402
      %s424 = sphi 0, %s426
      %s427 = sphi 0, %s424
      %s428 = sphi 0, %s427
      %s444 = sphi 0, %s428
      %s450 = sphi 0, %s452
      %s453 = sphi 0, %s450
      %s454 = sphi 0, %s453
      %s470 = sphi 0, %s454
      %s476 = sphi 0, %s478
      %s479 = sphi 0, %s476
      %s480 = sphi 0, %s479
      %s496 = sphi 0, %s480
      %s502 = sphi 0, %s504
      %s505 = sphi 0, %s502
      %s506 = sphi 0, %s505
      %s522 = sphi 0, %s506
      %s528 = sphi 0, %s530
      %s531 = sphi 0, %s528
      %s532 = sphi 0, %s531
      %s548 = sphi 0, %s532
      %s552 = sphi 0, %s552
      %s554 = sphi 0, %s552
      %s555 = sphi 0, %s554
      %s569 = sphi 0, %s555
    $region4: #{gn_block_forward.1} parent=1 // loop_header_branch
      %34 = sbr.rel (%p32) target = $region8
    $region5: #{gn_block_forward.1} parent=1 // loop_body
      %s36 = ssub.s32 %s31, 1
      %s37 = ssub.s32 %s31, 2
      %s38 = sadd.s32 %s31, 1
      %s40 = sadd.s32 %s39, 1
      %p43 = scmp.eq.s32.totalorder %s31, 2
      %p44 = scmp.ne.s32.totalorder %s39, %s41
      %p45 = scmp.eq.s32.totalorder %s31, 0
      %p46 = por %p44, %p45
      %p47 = scmp.ne.s32.totalorder %s39, %s41
      %p48 = scmp.eq.s32.totalorder %s36, 2
      %p49 = por %p47, %p48
      %p50 = scmp.ne.s32.totalorder %s41, %s42
      %p51 = scmp.eq.s32.totalorder %s36, 0
      %p52 = por %p50, %p51
      %p53 = scmp.ne.s32.totalorder %s41, %s42
      %p54 = scmp.eq.s32.totalorder %s37, 2
      %p55 = por %p53, %p54
      %p57 = scmp.ne.s32.totalorder %s42, %s56
      %p58 = scmp.eq.s32.totalorder %s37, 0
      %p59 = por %p57, %p58
      %s61 = sadd.s32 %s60, 1
      %p64 = scmp.eq.s32.totalorder %s31, 2
      %p65 = scmp.ne.s32.totalorder %s60, %s62
      %p66 = scmp.eq.s32.totalorder %s31, 0
      %p67 = por %p65, %p66
      %p68 = scmp.ne.s32.totalorder %s60, %s62
      %p69 = scmp.eq.s32.totalorder %s36, 2
      %p70 = por %p68, %p69
      %p71 = scmp.ne.s32.totalorder %s62, %s63
      %p72 = scmp.eq.s32.totalorder %s36, 0
      %p73 = por %p71, %p72
      %p74 = scmp.ne.s32.totalorder %s62, %s63
      %p75 = scmp.eq.s32.totalorder %s37, 2
      %p76 = por %p74, %p75
      %p78 = scmp.ne.s32.totalorder %s63, %s77
      %p79 = scmp.eq.s32.totalorder %s37, 0
      %p80 = por %p78, %p79
      %s82 = sadd.s32 %s81, 1
      %p85 = scmp.eq.s32.totalorder %s31, 2
      %p86 = scmp.ne.s32.totalorder %s81, %s83
      %p87 = scmp.eq.s32.totalorder %s31, 0
      %p88 = por %p86, %p87
      %p89 = scmp.ne.s32.totalorder %s81, %s83
      %p90 = scmp.eq.s32.totalorder %s36, 2
      %p91 = por %p89, %p90
      %p92 = scmp.ne.s32.totalorder %s83, %s84
      %p93 = scmp.eq.s32.totalorder %s36, 0
      %p94 = por %p92, %p93
      %p95 = scmp.ne.s32.totalorder %s83, %s84
      %p96 = scmp.eq.s32.totalorder %s37, 2
      %p97 = por %p95, %p96
      %p99 = scmp.ne.s32.totalorder %s84, %s98
      %p100 = scmp.eq.s32.totalorder %s37, 0
      %p101 = por %p99, %p100
      %s103 = sadd.s32 %s102, 1
      %p106 = scmp.eq.s32.totalorder %s31, 2
      %p107 = scmp.ne.s32.totalorder %s102, %s104
      %p108 = scmp.eq.s32.totalorder %s31, 0
      %p109 = por %p107, %p108
      %p110 = scmp.ne.s32.totalorder %s102, %s104
      %p111 = scmp.eq.s32.totalorder %s36, 2
      %p112 = por %p110, %p111
      %p113 = scmp.ne.s32.totalorder %s104, %s105
      %p114 = scmp.eq.s32.totalorder %s36, 0
      %p115 = por %p113, %p114
      %p116 = scmp.ne.s32.totalorder %s104, %s105
      %p117 = scmp.eq.s32.totalorder %s37, 2
      %p118 = por %p116, %p117
      %p120 = scmp.ne.s32.totalorder %s105, %s119
      %p121 = scmp.eq.s32.totalorder %s37, 0
      %p122 = por %p120, %p121
      %s124 = sadd.s32 %s123, 1
      %p127 = scmp.eq.s32.totalorder %s31, 2
      %p128 = scmp.ne.s32.totalorder %s123, %s125
      %p129 = scmp.eq.s32.totalorder %s31, 0
      %p130 = por %p128, %p129
      %p131 = scmp.ne.s32.totalorder %s123, %s125
      %p132 = scmp.eq.s32.totalorder %s36, 2
      %p133 = por %p131, %p132
      %p134 = scmp.ne.s32.totalorder %s125, %s126
      %p135 = scmp.eq.s32.totalorder %s36, 0
      %p136 = por %p134, %p135
      %p137 = scmp.ne.s32.totalorder %s125, %s126
      %p138 = scmp.eq.s32.totalorder %s37, 2
      %p139 = por %p137, %p138
      %p141 = scmp.ne.s32.totalorder %s126, %s140
      %p142 = scmp.eq.s32.totalorder %s37, 0
      %p143 = por %p141, %p142
      %s145 = sadd.s32 %s144, 1
      %p148 = scmp.eq.s32.totalorder %s31, 2
      %p149 = scmp.ne.s32.totalorder %s144, %s146
      %p150 = scmp.eq.s32.totalorder %s31, 0
      %p151 = por %p149, %p150
      %p152 = scmp.ne.s32.totalorder %s144, %s146
      %p153 = scmp.eq.s32.totalorder %s36, 2
      %p154 = por %p152, %p153
      %p155 = scmp.ne.s32.totalorder %s146, %s147
      %p156 = scmp.eq.s32.totalorder %s36, 0
      %p157 = por %p155, %p156
      %p158 = scmp.ne.s32.totalorder %s146, %s147
      %p159 = scmp.eq.s32.totalorder %s37, 2
      %p160 = por %p158, %p159
      %p162 = scmp.ne.s32.totalorder %s147, %s161
      %p163 = scmp.eq.s32.totalorder %s37, 0
      %p164 = por %p162, %p163
      %s166 = sadd.s32 %s165, 1
      %p169 = scmp.eq.s32.totalorder %s31, 2
      %p170 = scmp.ne.s32.totalorder %s165, %s167
      %p171 = scmp.eq.s32.totalorder %s31, 0
      %p172 = por %p170, %p171
      %p173 = scmp.ne.s32.totalorder %s165, %s167
      %p174 = scmp.eq.s32.totalorder %s36, 2
      %p175 = por %p173, %p174
      %p176 = scmp.ne.s32.totalorder %s167, %s168
      %p177 = scmp.eq.s32.totalorder %s36, 0
      %p178 = por %p176, %p177
      %p179 = scmp.ne.s32.totalorder %s167, %s168
      %p180 = scmp.eq.s32.totalorder %s37, 2
      %p181 = por %p179, %p180
      %p183 = scmp.ne.s32.totalorder %s168, %s182
      %p184 = scmp.eq.s32.totalorder %s37, 0
      %p185 = por %p183, %p184
      %s187 = sadd.s32 %s186, 1
      %p190 = scmp.eq.s32.totalorder %s31, 2
      %p191 = scmp.ne.s32.totalorder %s186, %s188
      %p192 = scmp.eq.s32.totalorder %s31, 0
      %p193 = por %p191, %p192
      %p194 = scmp.ne.s32.totalorder %s186, %s188
      %p195 = scmp.eq.s32.totalorder %s36, 2
      %p196 = por %p194, %p195
      %p197 = scmp.ne.s32.totalorder %s188, %s189
      %p198 = scmp.eq.s32.totalorder %s36, 0
      %p199 = por %p197, %p198
      %p200 = scmp.ne.s32.totalorder %s188, %s189
      %p201 = scmp.eq.s32.totalorder %s37, 2
      %p202 = por %p200, %p201
      %p204 = scmp.ne.s32.totalorder %s189, %s203
      %p205 = scmp.eq.s32.totalorder %s37, 0
      %p206 = por %p204, %p205
      %s208 = sadd.s32 %s207, 1
      %p211 = scmp.eq.s32.totalorder %s31, 2
      %p212 = scmp.ne.s32.totalorder %s207, %s209
      %p213 = scmp.eq.s32.totalorder %s31, 0
      %p214 = por %p212, %p213
      %p215 = scmp.ne.s32.totalorder %s207, %s209
      %p216 = scmp.eq.s32.totalorder %s36, 2
      %p217 = por %p215, %p216
      %p218 = scmp.ne.s32.totalorder %s209, %s210
      %p219 = scmp.eq.s32.totalorder %s36, 0
      %p220 = por %p218, %p219
      %p221 = scmp.ne.s32.totalorder %s209, %s210
      %p222 = scmp.eq.s32.totalorder %s37, 2
      %p223 = por %p221, %p222
      %p225 = scmp.ne.s32.totalorder %s210, %s224
      %p226 = scmp.eq.s32.totalorder %s37, 0
      %p227 = por %p225, %p226
      %s229 = sadd.s32 %s228, 1
      %p232 = scmp.eq.s32.totalorder %s31, 2
      %p233 = scmp.ne.s32.totalorder %s228, %s230
      %p234 = scmp.eq.s32.totalorder %s31, 0
      %p235 = por %p233, %p234
      %p236 = scmp.ne.s32.totalorder %s228, %s230
      %p237 = scmp.eq.s32.totalorder %s36, 2
      %p238 = por %p236, %p237
      %p239 = scmp.ne.s32.totalorder %s230, %s231
      %p240 = scmp.eq.s32.totalorder %s36, 0
      %p241 = por %p239, %p240
      %p242 = scmp.ne.s32.totalorder %s230, %s231
      %p243 = scmp.eq.s32.totalorder %s37, 2
      %p244 = por %p242, %p243
      %p246 = scmp.ne.s32.totalorder %s231, %s245
      %p247 = scmp.eq.s32.totalorder %s37, 0
      %p248 = por %p246, %p247
      %s250 = sadd.s32 %s249, 1
      %p253 = scmp.eq.s32.totalorder %s31, 2
      %p254 = scmp.ne.s32.totalorder %s249, %s251
      %p255 = scmp.eq.s32.totalorder %s31, 0
      %p256 = por %p254, %p255
      %p257 = scmp.ne.s32.totalorder %s249, %s251
      %p258 = scmp.eq.s32.totalorder %s36, 2
      %p259 = por %p257, %p258
      %p260 = scmp.ne.s32.totalorder %s251, %s252
      %p261 = scmp.eq.s32.totalorder %s36, 0
      %p262 = por %p260, %p261
      %p263 = scmp.ne.s32.totalorder %s251, %s252
      %p264 = scmp.eq.s32.totalorder %s37, 2
      %p265 = por %p263, %p264
      %p267 = scmp.ne.s32.totalorder %s252, %s266
      %p268 = scmp.eq.s32.totalorder %s37, 0
      %p269 = por %p267, %p268
      %s271 = sadd.s32 %s270, 1
      %p274 = scmp.eq.s32.totalorder %s31, 2
      %p275 = scmp.ne.s32.totalorder %s270, %s272
      %p276 = scmp.eq.s32.totalorder %s31, 0
      %p277 = por %p275, %p276
      %p278 = scmp.ne.s32.totalorder %s270, %s272
      %p279 = scmp.eq.s32.totalorder %s36, 2
      %p280 = por %p278, %p279
      %p281 = scmp.ne.s32.totalorder %s272, %s273
      %p282 = scmp.eq.s32.totalorder %s36, 0
      %p283 = por %p281, %p282
      %p284 = scmp.ne.s32.totalorder %s272, %s273
      %p285 = scmp.eq.s32.totalorder %s37, 2
      %p286 = por %p284, %p285
      %p288 = scmp.ne.s32.totalorder %s273, %s287
      %p289 = scmp.eq.s32.totalorder %s37, 0
      %p290 = por %p288, %p289
      %s292 = sadd.s32 %s291, 1
      %p295 = scmp.eq.s32.totalorder %s31, 2
      %p296 = scmp.ne.s32.totalorder %s291, %s293
      %p297 = scmp.eq.s32.totalorder %s31, 0
      %p298 = por %p296, %p297
      %p299 = scmp.ne.s32.totalorder %s291, %s293
      %p300 = scmp.eq.s32.totalorder %s36, 2
      %p301 = por %p299, %p300
      %p302 = scmp.ne.s32.totalorder %s293, %s294
      %p303 = scmp.eq.s32.totalorder %s36, 0
      %p304 = por %p302, %p303
      %p305 = scmp.ne.s32.totalorder %s293, %s294
      %p306 = scmp.eq.s32.totalorder %s37, 2
      %p307 = por %p305, %p306
      %p309 = scmp.ne.s32.totalorder %s294, %s308
      %p310 = scmp.eq.s32.totalorder %s37, 0
      %p311 = por %p309, %p310
      %s313 = sadd.s32 %s312, 1
      %p316 = scmp.eq.s32.totalorder %s31, 2
      %p317 = scmp.ne.s32.totalorder %s312, %s314
      %p318 = scmp.eq.s32.totalorder %s31, 0
      %p319 = por %p317, %p318
      %p320 = scmp.ne.s32.totalorder %s312, %s314
      %p321 = scmp.eq.s32.totalorder %s36, 2
      %p322 = por %p320, %p321
      %p323 = scmp.ne.s32.totalorder %s314, %s315
      %p324 = scmp.eq.s32.totalorder %s36, 0
      %p325 = por %p323, %p324
      %p326 = scmp.ne.s32.totalorder %s314, %s315
      %p327 = scmp.eq.s32.totalorder %s37, 2
      %p328 = por %p326, %p327
      %p330 = scmp.ne.s32.totalorder %s315, %s329
      %p331 = scmp.eq.s32.totalorder %s37, 0
      %p332 = por %p330, %p331
      %s334 = sadd.s32 %s333, 1
      %p337 = scmp.eq.s32.totalorder %s31, 2
      %p338 = scmp.ne.s32.totalorder %s333, %s335
      %p339 = scmp.eq.s32.totalorder %s31, 0
      %p340 = por %p338, %p339
      %p341 = scmp.ne.s32.totalorder %s333, %s335
      %p342 = scmp.eq.s32.totalorder %s36, 2
      %p343 = por %p341, %p342
      %p344 = scmp.ne.s32.totalorder %s335, %s336
      %p345 = scmp.eq.s32.totalorder %s36, 0
      %p346 = por %p344, %p345
      %p347 = scmp.ne.s32.totalorder %s335, %s336
      %p348 = scmp.eq.s32.totalorder %s37, 2
      %p349 = por %p347, %p348
      %p351 = scmp.ne.s32.totalorder %s336, %s350
      %p352 = scmp.eq.s32.totalorder %s37, 0
      %p353 = por %p351, %p352
      %s355 = sadd.s32 %s354, 1
      %p358 = scmp.eq.s32.totalorder %s31, 2
      %p359 = scmp.ne.s32.totalorder %s354, %s356
      %p360 = scmp.eq.s32.totalorder %s31, 0
      %p361 = por %p359, %p360
      %p362 = scmp.ne.s32.totalorder %s354, %s356
      %p363 = scmp.eq.s32.totalorder %s36, 2
      %p364 = por %p362, %p363
      %p365 = scmp.ne.s32.totalorder %s356, %s357
      %p366 = scmp.eq.s32.totalorder %s36, 0
      %p367 = por %p365, %p366
      %p368 = scmp.ne.s32.totalorder %s356, %s357
      %p369 = scmp.eq.s32.totalorder %s37, 2
      %p370 = por %p368, %p369
      %p372 = scmp.ne.s32.totalorder %s357, %s371
      %p373 = scmp.eq.s32.totalorder %s37, 0
      %p374 = por %p372, %p373
      %s376 = sadd.s32 %s375, 1
      %p379 = scmp.eq.s32.totalorder %s31, 2
      %p380 = scmp.ne.s32.totalorder %s375, %s377
      %p381 = scmp.eq.s32.totalorder %s31, 0
      %p382 = por %p380, %p381
      %p383 = scmp.ne.s32.totalorder %s375, %s377
      %p384 = scmp.eq.s32.totalorder %s36, 2
      %p385 = por %p383, %p384
      %p386 = scmp.ne.s32.totalorder %s377, %s378
      %p387 = scmp.eq.s32.totalorder %s36, 0
      %p388 = por %p386, %p387
      %p389 = scmp.ne.s32.totalorder %s377, %s378
      %p390 = scmp.eq.s32.totalorder %s37, 2
      %p391 = por %p389, %p390
      %p393 = scmp.ne.s32.totalorder %s378, %s392
      %p394 = scmp.eq.s32.totalorder %s37, 0
      %p395 = por %p393, %p394
      %s396 = ssub.s32 %s31, %s38
      %p397 = scmp.eq.s32.totalorder %s396, 0
      %s399 = sadd.s32 %s398, 1
      %s400 = scalar_select %p397, %s398, %s399
      %p403 = pneg %p397
      %p404 = scmp.eq.s32.totalorder %s31, 2
      %p405 = por %p403, %p404
      %p406 = scmp.ne.s32.totalorder %s398, %s401
      %p407 = scmp.eq.s32.totalorder %s31, 0
      %p408 = por %p406, %p407
      %p409 = scmp.ne.s32.totalorder %s398, %s401
      %p410 = scmp.eq.s32.totalorder %s36, 2
      %p411 = por %p409, %p410
      %p412 = scmp.ne.s32.totalorder %s401, %s402
      %p413 = scmp.eq.s32.totalorder %s36, 0
      %p414 = por %p412, %p413
      %p415 = scmp.ne.s32.totalorder %s401, %s402
      %p416 = scmp.eq.s32.totalorder %s37, 2
      %p417 = por %p415, %p416
      %p419 = scmp.ne.s32.totalorder %s402, %s418
      %p420 = scmp.eq.s32.totalorder %s37, 0
      %p421 = por %p419, %p420
      %s422 = ssub.s32 %s31, %s38
      %p423 = scmp.eq.s32.totalorder %s422, 0
      %s425 = sadd.s32 %s424, 1
      %s426 = scalar_select %p423, %s424, %s425
      %p429 = pneg %p423
      %p430 = scmp.eq.s32.totalorder %s31, 2
      %p431 = por %p429, %p430
      %p432 = scmp.ne.s32.totalorder %s424, %s427
      %p433 = scmp.eq.s32.totalorder %s31, 0
      %p434 = por %p432, %p433
      %p435 = scmp.ne.s32.totalorder %s424, %s427
      %p436 = scmp.eq.s32.totalorder %s36, 2
      %p437 = por %p435, %p436
      %p438 = scmp.ne.s32.totalorder %s427, %s428
      %p439 = scmp.eq.s32.totalorder %s36, 0
      %p440 = por %p438, %p439
      %p441 = scmp.ne.s32.totalorder %s427, %s428
      %p442 = scmp.eq.s32.totalorder %s37, 2
      %p443 = por %p441, %p442
      %p445 = scmp.ne.s32.totalorder %s428, %s444
      %p446 = scmp.eq.s32.totalorder %s37, 0
      %p447 = por %p445, %p446
      %s448 = ssub.s32 %s31, %s38
      %p449 = scmp.eq.s32.totalorder %s448, 0
      %s451 = sadd.s32 %s450, 1
      %s452 = scalar_select %p449, %s450, %s451
      %p455 = pneg %p449
      %p456 = scmp.eq.s32.totalorder %s31, 2
      %p457 = por %p455, %p456
      %p458 = scmp.ne.s32.totalorder %s450, %s453
      %p459 = scmp.eq.s32.totalorder %s31, 0
      %p460 = por %p458, %p459
      %p461 = scmp.ne.s32.totalorder %s450, %s453
      %p462 = scmp.eq.s32.totalorder %s36, 2
      %p463 = por %p461, %p462
      %p464 = scmp.ne.s32.totalorder %s453, %s454
      %p465 = scmp.eq.s32.totalorder %s36, 0
      %p466 = por %p464, %p465
      %p467 = scmp.ne.s32.totalorder %s453, %s454
      %p468 = scmp.eq.s32.totalorder %s37, 2
      %p469 = por %p467, %p468
      %p471 = scmp.ne.s32.totalorder %s454, %s470
      %p472 = scmp.eq.s32.totalorder %s37, 0
      %p473 = por %p471, %p472
      %s474 = ssub.s32 %s31, %s38
      %p475 = scmp.eq.s32.totalorder %s474, 0
      %s477 = sadd.s32 %s476, 1
      %s478 = scalar_select %p475, %s476, %s477
      %p481 = pneg %p475
      %p482 = scmp.eq.s32.totalorder %s31, 2
      %p483 = por %p481, %p482
      %p484 = scmp.ne.s32.totalorder %s476, %s479
      %p485 = scmp.eq.s32.totalorder %s31, 0
      %p486 = por %p484, %p485
      %p487 = scmp.ne.s32.totalorder %s476, %s479
      %p488 = scmp.eq.s32.totalorder %s36, 2
      %p489 = por %p487, %p488
      %p490 = scmp.ne.s32.totalorder %s479, %s480
      %p491 = scmp.eq.s32.totalorder %s36, 0
      %p492 = por %p490, %p491
      %p493 = scmp.ne.s32.totalorder %s479, %s480
      %p494 = scmp.eq.s32.totalorder %s37, 2
      %p495 = por %p493, %p494
      %p497 = scmp.ne.s32.totalorder %s480, %s496
      %p498 = scmp.eq.s32.totalorder %s37, 0
      %p499 = por %p497, %p498
      %s500 = ssub.s32 %s31, %s38
      %p501 = scmp.eq.s32.totalorder %s500, 0
      %s503 = sadd.s32 %s502, 1
      %s504 = scalar_select %p501, %s502, %s503
      %p507 = pneg %p501
      %p508 = scmp.eq.s32.totalorder %s31, 2
      %p509 = por %p507, %p508
      %p510 = scmp.ne.s32.totalorder %s502, %s505
      %p511 = scmp.eq.s32.totalorder %s31, 0
      %p512 = por %p510, %p511
      %p513 = scmp.ne.s32.totalorder %s502, %s505
      %p514 = scmp.eq.s32.totalorder %s36, 2
      %p515 = por %p513, %p514
      %p516 = scmp.ne.s32.totalorder %s505, %s506
      %p517 = scmp.eq.s32.totalorder %s36, 0
      %p518 = por %p516, %p517
      %p519 = scmp.ne.s32.totalorder %s505, %s506
      %p520 = scmp.eq.s32.totalorder %s37, 2
      %p521 = por %p519, %p520
      %p523 = scmp.ne.s32.totalorder %s506, %s522
      %p524 = scmp.eq.s32.totalorder %s37, 0
      %p525 = por %p523, %p524
      %s526 = ssub.s32 %s31, %s38
      %p527 = scmp.eq.s32.totalorder %s526, 0
      %s529 = sadd.s32 %s528, 1
      %s530 = scalar_select %p527, %s528, %s529
      %p533 = pneg %p527
      %p534 = scmp.eq.s32.totalorder %s31, 2
      %p535 = por %p533, %p534
      %p536 = scmp.ne.s32.totalorder %s528, %s531
      %p537 = scmp.eq.s32.totalorder %s31, 0
      %p538 = por %p536, %p537
      %p539 = scmp.ne.s32.totalorder %s528, %s531
      %p540 = scmp.eq.s32.totalorder %s36, 2
      %p541 = por %p539, %p540
      %p542 = scmp.ne.s32.totalorder %s531, %s532
      %p543 = scmp.eq.s32.totalorder %s36, 0
      %p544 = por %p542, %p543
      %p545 = scmp.ne.s32.totalorder %s531, %s532
      %p546 = scmp.eq.s32.totalorder %s37, 2
      %p547 = por %p545, %p546
      %p549 = scmp.ne.s32.totalorder %s532, %s548
      %p550 = scmp.eq.s32.totalorder %s37, 0
      %p551 = por %p549, %p550
      %s553 = sadd.s32 %s552, 1
      %p556 = scmp.eq.s32.totalorder %s31, 2
      %p557 = scmp.ne.s32.totalorder %s552, %s554
      %p558 = scmp.eq.s32.totalorder %s31, 0
      %p559 = por %p557, %p558
      %p560 = scmp.ne.s32.totalorder %s552, %s554
      %p561 = scmp.eq.s32.totalorder %s36, 2
      %p562 = por %p560, %p561
      %p563 = scmp.ne.s32.totalorder %s554, %s555
      %p564 = scmp.eq.s32.totalorder %s36, 0
      %p565 = por %p563, %p564
      %p566 = scmp.ne.s32.totalorder %s554, %s555
      %p567 = scmp.eq.s32.totalorder %s37, 2
      %p568 = por %p566, %p567
      %p570 = scmp.ne.s32.totalorder %s555, %s569
      %p571 = scmp.eq.s32.totalorder %s37, 0
      %p572 = por %p570, %p571
      %p573 = scmp.le.s32.totalorder 1, %s31
      %p574 = scmp.lt.s32.totalorder %s31, 4
      %p575 = pnand %p573, %p574
      %p576 = pneg %p575
      // Predicated region
      $region9: #{gn_block_forward.1} parent=5 // pred_check
        _
      $region10: #{gn_block_forward.1} parent=5 // pred_check_branch
        %578 = sbr.rel (%p575) target = $region12
      $region11: #{gn_block_forward.1} parent=5 // pred_region
        %s579 = ssub.s32 %s31, 1
        // Predicated region
        $region13: #{gn_block_forward.1} parent=11 // pred_check
          %p580 = pneg %p52
        $region14: #{gn_block_forward.1} parent=11 // pred_check_branch
          %582 = sbr.rel (%p580) target = $region16
        $region15: #{gn_block_forward.1} parent=11 // pred_region
          _
        $region16: #{gn_block_forward.1} parent=11 // pred_fallthru
          _
        // Predicated region
        $region17: #{gn_block_forward.1} parent=11 // pred_check
          %p583 = pneg %p73
        $region18: #{gn_block_forward.1} parent=11 // pred_check_branch
          %585 = sbr.rel (%p583) target = $region20
        $region19: #{gn_block_forward.1} parent=11 // pred_region
          _
        $region20: #{gn_block_forward.1} parent=11 // pred_fallthru
          _
        // Predicated region
        $region21: #{gn_block_forward.1} parent=11 // pred_check
          %p586 = pneg %p94
        $region22: #{gn_block_forward.1} parent=11 // pred_check_branch
          %588 = sbr.rel (%p586) target = $region24
        $region23: #{gn_block_forward.1} parent=11 // pred_region
          _
        $region24: #{gn_block_forward.1} parent=11 // pred_fallthru
          _
        // Predicated region
        $region25: #{gn_block_forward.1} parent=11 // pred_check
          %p589 = pneg %p115
        $region26: #{gn_block_forward.1} parent=11 // pred_check_branch
          %591 = sbr.rel (%p589) target = $region28
        $region27: #{gn_block_forward.1} parent=11 // pred_region
          _
        $region28: #{gn_block_forward.1} parent=11 // pred_fallthru
          _
        // Predicated region
        $region29: #{gn_block_forward.1} parent=11 // pred_check
          %p592 = pneg %p136
        $region30: #{gn_block_forward.1} parent=11 // pred_check_branch
          %594 = sbr.rel (%p592) target = $region32
        $region31: #{gn_block_forward.1} parent=11 // pred_region
          _
        $region32: #{gn_block_forward.1} parent=11 // pred_fallthru
          _
        // Predicated region
        $region33: #{gn_block_forward.1} parent=11 // pred_check
          %p595 = pneg %p157
        $region34: #{gn_block_forward.1} parent=11 // pred_check_branch
          %597 = sbr.rel (%p595) target = $region36
        $region35: #{gn_block_forward.1} parent=11 // pred_region
          _
        $region36: #{gn_block_forward.1} parent=11 // pred_fallthru
          _
        // Predicated region
        $region37: #{gn_block_forward.1} parent=11 // pred_check
          %p598 = pneg %p178
        $region38: #{gn_block_forward.1} parent=11 // pred_check_branch
          %600 = sbr.rel (%p598) target = $region40
        $region39: #{gn_block_forward.1} parent=11 // pred_region
          _
        $region40: #{gn_block_forward.1} parent=11 // pred_fallthru
          _
        // Predicated region
        $region41: #{gn_block_forward.1} parent=11 // pred_check
          %p601 = pneg %p199
        $region42: #{gn_block_forward.1} parent=11 // pred_check_branch
          %603 = sbr.rel (%p601) target = $region44
        $region43: #{gn_block_forward.1} parent=11 // pred_region
          _
        $region44: #{gn_block_forward.1} parent=11 // pred_fallthru
          _
        // Predicated region
        $region45: #{gn_block_forward.1} parent=11 // pred_check
          %p604 = pneg %p220
        $region46: #{gn_block_forward.1} parent=11 // pred_check_branch
          %606 = sbr.rel (%p604) target = $region48
        $region47: #{gn_block_forward.1} parent=11 // pred_region
          _
        $region48: #{gn_block_forward.1} parent=11 // pred_fallthru
          _
        // Predicated region
        $region49: #{gn_block_forward.1} parent=11 // pred_check
          %p607 = pneg %p241
        $region50: #{gn_block_forward.1} parent=11 // pred_check_branch
          %609 = sbr.rel (%p607) target = $region52
        $region51: #{gn_block_forward.1} parent=11 // pred_region
          _
        $region52: #{gn_block_forward.1} parent=11 // pred_fallthru
          _
        // Predicated region
        $region53: #{gn_block_forward.1} parent=11 // pred_check
          %p610 = pneg %p262
        $region54: #{gn_block_forward.1} parent=11 // pred_check_branch
          %612 = sbr.rel (%p610) target = $region56
        $region55: #{gn_block_forward.1} parent=11 // pred_region
          _
        $region56: #{gn_block_forward.1} parent=11 // pred_fallthru
          _
        // Predicated region
        $region57: #{gn_block_forward.1} parent=11 // pred_check
          %p613 = pneg %p283
        $region58: #{gn_block_forward.1} parent=11 // pred_check_branch
          %615 = sbr.rel (%p613) target = $region60
        $region59: #{gn_block_forward.1} parent=11 // pred_region
          _
        $region60: #{gn_block_forward.1} parent=11 // pred_fallthru
          _
        // Predicated region
        $region61: #{gn_block_forward.1} parent=11 // pred_check
          %p616 = pneg %p304
        $region62: #{gn_block_forward.1} parent=11 // pred_check_branch
          %618 = sbr.rel (%p616) target = $region64
        $region63: #{gn_block_forward.1} parent=11 // pred_region
          _
        $region64: #{gn_block_forward.1} parent=11 // pred_fallthru
          _
        // Predicated region
        $region65: #{gn_block_forward.1} parent=11 // pred_check
          %p619 = pneg %p325
        $region66: #{gn_block_forward.1} parent=11 // pred_check_branch
          %621 = sbr.rel (%p619) target = $region68
        $region67: #{gn_block_forward.1} parent=11 // pred_region
          _
        $region68: #{gn_block_forward.1} parent=11 // pred_fallthru
          _
        // Predicated region
        $region69: #{gn_block_forward.1} parent=11 // pred_check
          %p622 = pneg %p346
        $region70: #{gn_block_forward.1} parent=11 // pred_check_branch
          %624 = sbr.rel (%p622) target = $region72
        $region71: #{gn_block_forward.1} parent=11 // pred_region
          _
        $region72: #{gn_block_forward.1} parent=11 // pred_fallthru
          _
        // Predicated region
        $region73: #{gn_block_forward.1} parent=11 // pred_check
          %p625 = pneg %p367
        $region74: #{gn_block_forward.1} parent=11 // pred_check_branch
          %627 = sbr.rel (%p625) target = $region76
        $region75: #{gn_block_forward.1} parent=11 // pred_region
          _
        $region76: #{gn_block_forward.1} parent=11 // pred_fallthru
          _
        // Predicated region
        $region77: #{gn_block_forward.1} parent=11 // pred_check
          %p628 = pneg %p388
        $region78: #{gn_block_forward.1} parent=11 // pred_check_branch
          %630 = sbr.rel (%p628) target = $region80
        $region79: #{gn_block_forward.1} parent=11 // pred_region
          _
        $region80: #{gn_block_forward.1} parent=11 // pred_fallthru
          _
      $region12: #{gn_block_forward.1} parent=5 // pred_fallthru
        _
      %p631 = scmp.lt.s32.totalorder %s31, 3
      // Predicated region
      $region81: #{gn_block_forward.1} parent=5 // pred_check
        %p632 = pneg %p631
      $region82: #{gn_block_forward.1} parent=5 // pred_check_branch
        %634 = sbr.rel (%p632) target = $region84
      $region83: #{gn_block_forward.1} parent=5 // pred_region
        // Predicated region
        $region85: #{gn_block_forward.1} parent=83 // pred_check
          %p635 = pneg %p408
        $region86: #{gn_block_forward.1} parent=83 // pred_check_branch
          %637 = sbr.rel (%p635) target = $region88
        $region87: #{gn_block_forward.1} parent=83 // pred_region
          %s638 = smul.u32 2, %s31
          %p639 = scmp.lt.s32.totalorder %s638, 5
          %s640 = scalar_select %p639, %s638, 5
          %s641 = smul.addr %s640, 4
          %s642 = scalar_lea.vmem %s17, %s641
          %s643 = smul.u32 2, %s31
        $region88: #{gn_block_forward.1} parent=83 // pred_fallthru
          _
        // Predicated region
        $region89: #{gn_block_forward.1} parent=83 // pred_check
          %p644 = pneg %p434
        $region90: #{gn_block_forward.1} parent=83 // pred_check_branch
          %646 = sbr.rel (%p644) target = $region92
        $region91: #{gn_block_forward.1} parent=83 // pred_region
          %s647 = smul.u32 2, %s31
          %p648 = scmp.lt.s32.totalorder %s647, 5
          %s649 = scalar_select %p648, %s647, 5
          %s650 = smul.addr %s649, 4
          %s651 = scalar_lea.vmem %s18, %s650
          %s652 = smul.u32 2, %s31
        $region92: #{gn_block_forward.1} parent=83 // pred_fallthru
          _
        // Predicated region
        $region93: #{gn_block_forward.1} parent=83 // pred_check
          %p653 = pneg %p460
        $region94: #{gn_block_forward.1} parent=83 // pred_check_branch
          %655 = sbr.rel (%p653) target = $region96
        $region95: #{gn_block_forward.1} parent=83 // pred_region
          %s656 = smul.u32 2, %s31
          %p657 = scmp.lt.s32.totalorder %s656, 5
          %s658 = scalar_select %p657, %s656, 5
          %s659 = smul.addr %s658, 8
          %s660 = scalar_lea.vmem %s19, %s659
          %s661 = smul.u32 2, %s31
        $region96: #{gn_block_forward.1} parent=83 // pred_fallthru
          _
        // Predicated region
        $region97: #{gn_block_forward.1} parent=83 // pred_check
          %p662 = pneg %p486
        $region98: #{gn_block_forward.1} parent=83 // pred_check_branch
          %664 = sbr.rel (%p662) target = $region100
        $region99: #{gn_block_forward.1} parent=83 // pred_region
          %s665 = smul.u32 2, %s31
          %p666 = scmp.lt.s32.totalorder %s665, 5
          %s667 = scalar_select %p666, %s665, 5
          %s668 = smul.addr %s667, 8
          %s669 = scalar_lea.vmem %s20, %s668
          %s670 = smul.u32 2, %s31
        $region100: #{gn_block_forward.1} parent=83 // pred_fallthru
          _
        // Predicated region
        $region101: #{gn_block_forward.1} parent=83 // pred_check
          %p671 = pneg %p512
        $region102: #{gn_block_forward.1} parent=83 // pred_check_branch
          %673 = sbr.rel (%p671) target = $region104
        $region103: #{gn_block_forward.1} parent=83 // pred_region
          %s674 = smul.u32 2, %s31
          %p675 = scmp.lt.s32.totalorder %s674, 5
          %s676 = scalar_select %p675, %s674, 5
          %s677 = smul.addr %s676, 4
          %s678 = scalar_lea.vmem %s21, %s677
          %s679 = smul.u32 2, %s31
        $region104: #{gn_block_forward.1} parent=83 // pred_fallthru
          _
      $region84: #{gn_block_forward.1} parent=5 // pred_fallthru
        _
      %p680 = scmp.le.s32.totalorder 1, %s31
      %p681 = scmp.lt.s32.totalorder %s31, 4
      %p682 = pnand %p680, %p681
      %p683 = pneg %p682
      // Predicated region
      $region105: #{gn_block_forward.1} parent=5 // pred_check
        _
      $region106: #{gn_block_forward.1} parent=5 // pred_check_branch
        %685 = sbr.rel (%p682) target = $region108
      $region107: #{gn_block_forward.1} parent=5 // pred_region
        %s686 = ssub.s32 %s31, 1
        %p687 = pneg %p52
        %p688 = pneg %p49
        %p689 = pneg %p73
        %p690 = pneg %p70
        %p691 = pneg %p94
        %p692 = pneg %p91
        %p693 = pneg %p115
        %p694 = pneg %p112
        %p695 = pneg %p136
        %p696 = pneg %p133
        %p697 = pneg %p157
        %p698 = pneg %p154
        %p699 = pneg %p178
        %p700 = pneg %p175
        %p701 = pneg %p199
        %p702 = pneg %p196
        %p703 = pneg %p220
        %p704 = pneg %p217
        %p705 = pneg %p241
        %p706 = pneg %p238
        %p707 = pneg %p262
        %p708 = pneg %p259
        %p709 = pneg %p283
        %p710 = pneg %p280
        %p711 = pneg %p304
        %p712 = pneg %p301
        %p713 = pneg %p325
        %p714 = pneg %p322
        %p715 = pneg %p346
        %p716 = pneg %p343
        %p717 = pneg %p367
        %p718 = pneg %p364
        %p719 = pneg %p388
        %p720 = pneg %p385
        %s721 = smul.u32 2, %s36
        %p722 = scmp.lt.s32.totalorder %s721, 5
        %s723 = scalar_select %p722, %s721, 5
        %s724 = smul.addr %s723, 4
        %s725 = scalar_lea.vmem %s17, %s724
        %p726 = pneg %p414
        %p727 = pneg %p411
        %s728 = smul.u32 2, %s36
        %p729 = scmp.lt.s32.totalorder %s728, 5
        %s730 = scalar_select %p729, %s728, 5
        %s731 = smul.addr %s730, 4
        %s732 = scalar_lea.vmem %s18, %s731
        %p733 = pneg %p440
        %p734 = pneg %p437
        %s735 = smul.u32 2, %s36
        %p736 = scmp.lt.s32.totalorder %s735, 5
        %s737 = scalar_select %p736, %s735, 5
        %s738 = smul.addr %s737, 8
        %s739 = scalar_lea.vmem %s19, %s738
        %p740 = pneg %p466
        %p741 = pneg %p463
        %s742 = smul.u32 2, %s36
        %p743 = scmp.lt.s32.totalorder %s742, 5
        %s744 = scalar_select %p743, %s742, 5
        %s745 = smul.addr %s744, 8
        %s746 = scalar_lea.vmem %s20, %s745
        %p747 = pneg %p492
        %p748 = pneg %p489
        %s749 = smul.u32 2, %s36
        %p750 = scmp.lt.s32.totalorder %s749, 5
        %s751 = scalar_select %p750, %s749, 5
        %s752 = smul.addr %s751, 4
        %s753 = scalar_lea.vmem %s21, %s752
        %p754 = pneg %p518
        %p755 = pneg %p515
        %p756 = pneg %p544
        %p757 = pneg %p541
        %s758 = smul.u32 2, %s36
        %p759 = scmp.lt.s32.totalorder %s758, 5
        %s760 = scalar_select %p759, %s758, 5
        %s761 = smul.addr %s760, 8
        %s762 = scalar_lea.vmem %s22, %s761
        %p763 = pneg %p565
        %p764 = pneg %p562
        %s765 = smul.u32 2, %s36
        %p766 = scmp.lt.s32.totalorder %s765, 5
        %s767 = scalar_select %p766, %s765, 5
        %s768 = smul.addr %s767, 4
        %s769 = scalar_lea.vmem %s17, %s768
        %s770 = smul.u32 2, %s36
        %s771 = smul.u32 2, %s36
        %p772 = scmp.lt.s32.totalorder %s771, 5
        %s773 = scalar_select %p772, %s771, 5
        %s774 = smul.addr %s773, 4
        %s775 = scalar_lea.vmem %s18, %s774
        %s776 = smul.u32 2, %s36
        %s777 = smul.u32 2, %s36
        %p778 = scmp.lt.s32.totalorder %s777, 5
        %s779 = scalar_select %p778, %s777, 5
        %s780 = smul.addr %s779, 8
        %s781 = scalar_lea.vmem %s19, %s780
        %s782 = smul.u32 2, %s36
        %s783 = smul.u32 2, %s36
        %p784 = scmp.lt.s32.totalorder %s783, 5
        %s785 = scalar_select %p784, %s783, 5
        %s786 = smul.addr %s785, 8
        %s787 = scalar_lea.vmem %s20, %s786
        %s788 = smul.u32 2, %s36
        %s789 = smul.u32 2, %s36
        %p790 = scmp.lt.s32.totalorder %s789, 5
        %s791 = scalar_select %p790, %s789, 5
        %s792 = smul.addr %s791, 4
        %s793 = scalar_lea.vmem %s21, %s792
        %s794 = smul.u32 2, %s36
        %s795 = smul.u32 2, %s36
        %p796 = scmp.lt.s32.totalorder %s795, 5
        %s797 = scalar_select %p796, %s795, 5
        %s798 = smul.addr %s797, 8
        %s799 = scalar_lea.vmem %s22, %s798
        %s800 = smul.u32 2, %s36
        %p802 = scmp.eq.s32.totalorder %s36, 0
        // Predicated region
        $region109: #{gn_block_forward.1} parent=107 // pred_check
          %p803 = pneg %p802
        $region110: #{gn_block_forward.1} parent=107 // pred_check_branch
          %805 = sbr.rel (%p803) target = $region112
        $region111: #{gn_block_forward.1} parent=107 // pred_region
          %v806 = vld [vmem:[%s0] sm:$0xf]
          %v807 = vld [vmem:[%s0 + $0x4] sm:$0xf]
          %v808 = vld [vmem:[%s6] sm:$0xf]
          %v809 = vld [vmem:[%s6 + $0x4] sm:$0xf]
          %v810 = vld [vmem:[%s6 + $0x8] sm:$0xf]
          %v811 = vld [vmem:[%s6 + $0xc] sm:$0xf]
          %v812 = vld [vmem:[%s1] sm:$0xf]
          %v813 = vld [vmem:[%s1 + $0x4] sm:$0xf]
          %v814 = vld [vmem:[%s7] sm:$0xf]
          %v815 = vld [vmem:[%s7 + $0x4] sm:$0xf]
          %v816 = vld [vmem:[%s7 + $0x8] sm:$0xf]
          %v817 = vld [vmem:[%s7 + $0xc] sm:$0xf]
          %v820 = vunpack.c.l.b16 %v812
          %v821 = vunpack.c.l.b16 %v813
          %v822 = vpack.c.b16 %v821, %v820
          %v827 = vunpack.c.l.b16 %v814
          %v828 = vunpack.c.l.b16 %v815
          %v829 = vunpack.c.l.b16 %v816
          %v830 = vunpack.c.l.b16 %v817
          %v831 = vpack.c.b16 %v828, %v827
          %v832 = vpack.c.b16 %v830, %v829
          %vm835 = vcmask 261120
          %v837 = vsel %vm835, %v822, 0
          %839 = vmatprep.subr.bf16.mxu0 0
          %840 = vmatpush1.bf16.msra.mxu0 %v831
          %841 = vmatprep.subr.bf16.mxu0 0
          %842 = vmatpush1.bf16.msra.mxu0 %v832
          %843 = vmatprep.subr.bf16.mxu0 0
          %844 = vmatpush1.bf16.msra.mxu0 0
          %845 = vmatprep.subr.bf16.mxu0 0
          %846 = vmatpush1.bf16.msra.mxu0 0
          %847 = vmatprep.subr.bf16.mxu0 0
          %848 = vmatpush1.bf16.msra.mxu0 0
          %849 = vmatprep.subr.bf16.mxu0 0
          %850 = vmatpush1.bf16.msra.mxu0 0
          %851 = vmatprep.subr.bf16.mxu0 0
          %852 = vmatpush1.bf16.msra.mxu0 0
          %853 = vmatprep.subr.bf16.mxu0 0
          %854 = vmatpush1.bf16.msra.mxu0 0
          %855 = vmatprep.subr.bf16.mxu0 0
          %856 = vmatpush1.bf16.msra.mxu0 0
          %857 = vmatprep.subr.bf16.mxu0 0
          %858 = vmatpush1.bf16.msra.mxu0 0
          %859 = vmatprep.subr.bf16.mxu0 0
          %860 = vmatpush1.bf16.msra.mxu0 0
          %861 = vmatprep.subr.bf16.mxu0 0
          %862 = vmatpush1.bf16.msra.mxu0 0
          %863 = vmatprep.subr.bf16.mxu0 0
          %864 = vmatpush1.bf16.msra.mxu0 0
          %865 = vmatprep.subr.bf16.mxu0 0
          %866 = vmatpush1.bf16.msra.mxu0 0
          %867 = vmatprep.subr.bf16.mxu0 0
          %868 = vmatpush1.bf16.msra.mxu0 0
          %869 = vmatprep.subr.bf16.mxu0 0
          %870 = vmatpush1.bf16.msra.mxu0 0
          %871 = vmatprep.mubr.bf16.mxu0 0
          %872 = vmatmul.mubr.bf16.gmra.mrb[0].mxu0 %v837
          %v873 = vpop.f32.mrb[0].mxu0
          %v874 = vadd.f32 0.0, %v873
          %v875 = vpop.f32.mrb[0].mxu0
          %v876 = vpop.f32.mrb[0].mxu0
          %v877 = vadd.f32 0.0, %v876
          %v878 = vpop.f32.mrb[0].mxu0
          %879 = vdwg.mxu0
          %v882 = vunpack.c.l.b16 %v806
          %v883 = vunpack.c.l.b16 %v807
          %v884 = vpack.c.b16 %v883, %v882
          %v889 = vunpack.c.l.b16 %v808
          %v890 = vunpack.c.l.b16 %v809
          %v891 = vunpack.c.l.b16 %v810
          %v892 = vunpack.c.l.b16 %v811
          %v893 = vpack.c.b16 %v890, %v889
          %v894 = vpack.c.b16 %v892, %v891
          %v898 = vsel %vm835, %v884, 0
          %900 = vmatprep.subr.bf16.mxu0 0
          %901 = vmatpush1.bf16.msra.mxu0 %v893
          %902 = vmatprep.subr.bf16.mxu0 0
          %903 = vmatpush1.bf16.msra.mxu0 %v894
          %904 = vmatprep.subr.bf16.mxu0 0
          %905 = vmatpush1.bf16.msra.mxu0 0
          %906 = vmatprep.subr.bf16.mxu0 0
          %907 = vmatpush1.bf16.msra.mxu0 0
          %908 = vmatprep.subr.bf16.mxu0 0
          %909 = vmatpush1.bf16.msra.mxu0 0
          %910 = vmatprep.subr.bf16.mxu0 0
          %911 = vmatpush1.bf16.msra.mxu0 0
          %912 = vmatprep.subr.bf16.mxu0 0
          %913 = vmatpush1.bf16.msra.mxu0 0
          %914 = vmatprep.subr.bf16.mxu0 0
          %915 = vmatpush1.bf16.msra.mxu0 0
          %916 = vmatprep.subr.bf16.mxu0 0
          %917 = vmatpush1.bf16.msra.mxu0 0
          %918 = vmatprep.subr.bf16.mxu0 0
          %919 = vmatpush1.bf16.msra.mxu0 0
          %920 = vmatprep.subr.bf16.mxu0 0
          %921 = vmatpush1.bf16.msra.mxu0 0
          %922 = vmatprep.subr.bf16.mxu0 0
          %923 = vmatpush1.bf16.msra.mxu0 0
          %924 = vmatprep.subr.bf16.mxu0 0
          %925 = vmatpush1.bf16.msra.mxu0 0
          %926 = vmatprep.subr.bf16.mxu0 0
          %927 = vmatpush1.bf16.msra.mxu0 0
          %928 = vmatprep.subr.bf16.mxu0 0
          %929 = vmatpush1.bf16.msra.mxu0 0
          %930 = vmatprep.subr.bf16.mxu0 0
          %931 = vmatpush1.bf16.msra.mxu0 0
          %932 = vmatprep.mubr.bf16.mxu0 0
          %933 = vmatmul.mubr.bf16.gmra.mrb[0].mxu0 %v898
          %v934 = vpop.f32.mrb[0].mxu0
          %v935 = vadd.f32 %v874, %v934
          %v936 = vpop.f32.mrb[0].mxu0
          %v937 = vpop.f32.mrb[0].mxu0
          %v938 = vadd.f32 %v877, %v937
          %v939 = vpop.f32.mrb[0].mxu0
          %940 = vdwg.mxu0
          %v941 = vld [vmem:[%s2] sm:$0xf]
          %v942 = vld [vmem:[%s2 + $0x4] sm:$0xf]
          %v943 = vld [vmem:[%s8] sm:$0xf]
          %v944 = vld [vmem:[%s8 + $0x4] sm:$0xf]
          %v945 = vld [vmem:[%s8 + $0x8] sm:$0xf]
          %v946 = vld [vmem:[%s8 + $0xc] sm:$0xf]
          %v949 = vunpack.c.l.b16 %v941
          %v950 = vunpack.c.l.b16 %v942
          %v951 = vpack.c.b16 %v950, %v949
          %v956 = vunpack.c.l.b16 %v943
          %v957 = vunpack.c.l.b16 %v944
          %v958 = vunpack.c.l.b16 %v945
          %v959 = vunpack.c.l.b16 %v946
          %v960 = vpack.c.b16 %v957, %v956
          %v961 = vpack.c.b16 %v959, %v958
          %v965 = vsel %vm835, %v951, 0
          %967 = vmatprep.subr.bf16.mxu0 0
          %968 = vmatpush1.bf16.msra.mxu0 %v960
          %969 = vmatprep.subr.bf16.mxu0 0
          %970 = vmatpush1.bf16.msra.mxu0 %v961
          %971 = vmatprep.subr.bf16.mxu0 0
          %972 = vmatpush1.bf16.msra.mxu0 0
          %973 = vmatprep.subr.bf16.mxu0 0
          %974 = vmatpush1.bf16.msra.mxu0 0
          %975 = vmatprep.subr.bf16.mxu0 0
          %976 = vmatpush1.bf16.msra.mxu0 0
          %977 = vmatprep.subr.bf16.mxu0 0
          %978 = vmatpush1.bf16.msra.mxu0 0
          %979 = vmatprep.subr.bf16.mxu0 0
          %980 = vmatpush1.bf16.msra.mxu0 0
          %981 = vmatprep.subr.bf16.mxu0 0
          %982 = vmatpush1.bf16.msra.mxu0 0
          %983 = vmatprep.subr.bf16.mxu0 0
          %984 = vmatpush1.bf16.msra.mxu0 0
          %985 = vmatprep.subr.bf16.mxu0 0
          %986 = vmatpush1.bf16.msra.mxu0 0
          %987 = vmatprep.subr.bf16.mxu0 0
          %988 = vmatpush1.bf16.msra.mxu0 0
          %989 = vmatprep.subr.bf16.mxu0 0
          %990 = vmatpush1.bf16.msra.mxu0 0
          %991 = vmatprep.subr.bf16.mxu0 0
          %992 = vmatpush1.bf16.msra.mxu0 0
          %993 = vmatprep.subr.bf16.mxu0 0
          %994 = vmatpush1.bf16.msra.mxu0 0
          %995 = vmatprep.subr.bf16.mxu0 0
          %996 = vmatpush1.bf16.msra.mxu0 0
          %997 = vmatprep.subr.bf16.mxu0 0
          %998 = vmatpush1.bf16.msra.mxu0 0
          %999 = vmatprep.mubr.bf16.mxu0 0
          %1000 = vmatmul.mubr.bf16.gmra.mrb[0].mxu0 %v965
          %v1001 = vpop.f32.mrb[0].mxu0
          %v1002 = vadd.f32 0.0, %v1001
          %v1003 = vpop.f32.mrb[0].mxu0
          %v1004 = vpop.f32.mrb[0].mxu0
          %v1005 = vadd.f32 0.0, %v1004
          %v1006 = vpop.f32.mrb[0].mxu0
          %1007 = vdwg.mxu0
          %v1008 = vadd.f32 %v935, %v1002
          %v1009 = vadd.f32 %v938, %v1005
          %1010 = vst.msk [vmem:[#allocation2] sm:$0xff] %vm835, 0.0
          %1011 = vst.msk [vmem:[#allocation2 + $0x8] sm:$0xff] %vm835, 0.0
          %1012 = vst.msk [vmem:[#allocation2 + $0x10] sm:$0xff] %vm835, 0.0
          %1013 = vst.msk [vmem:[#allocation2 + $0x18] sm:$0xff] %vm835, 0.0
          %v1014 = vld [vmem:[%s5] sm:$0xf]
          %v1015 = vld [vmem:[%s5 + $0x4] sm:$0xf]
          %v1016 = vpack.c.bf16 %v1009, %v1008
          %v1019 = vunpack.c.l.b16 %v1014
          %v1020 = vunpack.c.l.b16 %v1015
          %v1021 = vpack.c.b16 %v1020, %v1019
          %vm1022 = vcmask 130048
          %v1024 = vsel %vm1022, %v1021, 0
          %1026 = vmatprep.subr.bf16.mxu0 0
          %1027 = vmatpush1.bf16.msra.mxu0 %v1016
          %1028 = vmatprep.subr.bf16.mxu0 0
          %1029 = vmatpush1.bf16.msra.mxu0 0
          %1030 = vmatprep.subr.bf16.mxu0 0
          %1031 = vmatpush1.bf16.msra.mxu0 0
          %1032 = vmatprep.subr.bf16.mxu0 0
          %1033 = vmatpush1.bf16.msra.mxu0 0
          %1034 = vmatprep.subr.bf16.mxu0 0
          %1035 = vmatpush1.bf16.msra.mxu0 0
          %1036 = vmatprep.subr.bf16.mxu0 0
          %1037 = vmatpush1.bf16.msra.mxu0 0
          %1038 = vmatprep.subr.bf16.mxu0 0
          %1039 = vmatpush1.bf16.msra.mxu0 0
          %1040 = vmatprep.subr.bf16.mxu0 0
          %1041 = vmatpush1.bf16.msra.mxu0 0
          %1042 = vmatprep.subr.bf16.mxu0 0
          %1043 = vmatpush1.bf16.msra.mxu0 0
          %1044 = vmatprep.subr.bf16.mxu0 0
          %1045 = vmatpush1.bf16.msra.mxu0 0
          %1046 = vmatprep.subr.bf16.mxu0 0
          %1047 = vmatpush1.bf16.msra.mxu0 0
          %1048 = vmatprep.subr.bf16.mxu0 0
          %1049 = vmatpush1.bf16.msra.mxu0 0
          %1050 = vmatprep.subr.bf16.mxu0 0
          %1051 = vmatpush1.bf16.msra.mxu0 0
          %1052 = vmatprep.subr.bf16.mxu0 0
          %1053 = vmatpush1.bf16.msra.mxu0 0
          %1054 = vmatprep.subr.bf16.mxu0 0
          %1055 = vmatpush1.bf16.msra.mxu0 0
          %1056 = vmatprep.subr.bf16.mxu0 0
          %1057 = vmatpush1.bf16.msra.mxu0 0
          %1058 = vmatprep.mubr.bf16.mxu0 0
          %1059 = vmatmul.mubr.bf16.gmra.mrb[0].mxu0 %v1024
          %v1060 = vpop.f32.mrb[0].mxu0
          %v1061 = vadd.f32 0.0, %v1060
          %v1062 = vpop.f32.mrb[0].mxu0
          %v1063 = vpop.f32.mrb[0].mxu0
          %v1064 = vadd.f32 0.0, %v1063
          %v1065 = vpop.f32.mrb[0].mxu0
          %1066 = vdwg.mxu0
          %1067 = vst.msk [vmem:[#allocation2] sm:$0xff] %vm835, %v1061
          %1068 = vst.msk [vmem:[#allocation2 + $0x8] sm:$0xff] %vm835, %v1064
          %v1069 = vld [vmem:[%s3] sm:$0xff]
          %v1070 = vld [vmem:[%s3 + $0x8] sm:$0xff]
          %v1071 = vpack.c.bf16 %v1070, %v1069
          %v1072 = vld [vmem:[%s12] sm:$0xf]
          %v1073 = vld [vmem:[%s12 + $0x4] sm:$0xf]
          %v1074 = vld [vmem:[%s12 + $0x8] sm:$0xf]
          %v1075 = vld [vmem:[%s12 + $0xc] sm:$0xf]
          %v1080 = vunpack.c.l.b16 %v1072
          %v1081 = vunpack.c.l.b16 %v1073
          %v1082 = vunpack.c.l.b16 %v1074
          %v1083 = vunpack.c.l.b16 %v1075
          %v1084 = vpack.c.b16 %v1081, %v1080
          %v1085 = vpack.c.b16 %v1083, %v1082
          %v1089 = vsel %vm835, %v1071, 0
          %1091 = vmatprep.subr.bf16.mxu0 0
          %1092 = vmatpush1.bf16.msra.mxu0 %v1084
          %1093 = vmatprep.subr.bf16.mxu0 0
          %1094 = vmatpush1.bf16.msra.mxu0 %v1085
          %1095 = vmatprep.subr.bf16.mxu0 0
          %1096 = vmatpush1.bf16.msra.mxu0 0
          %1097 = vmatprep.subr.bf16.mxu0 0
          %1098 = vmatpush1.bf16.msra.mxu0 0
          %1099 = vmatprep.subr.bf16.mxu0 0
          %1100 = vmatpush1.bf16.msra.mxu0 0
          %1101 = vmatprep.subr.bf16.mxu0 0
          %1102 = vmatpush1.bf16.msra.mxu0 0
          %1103 = vmatprep.subr.bf16.mxu0 0
          %1104 = vmatpush1.bf16.msra.mxu0 0
          %1105 = vmatprep.subr.bf16.mxu0 0
          %1106 = vmatpush1.bf16.msra.mxu0 0
          %1107 = vmatprep.subr.bf16.mxu0 0
          %1108 = vmatpush1.bf16.msra.mxu0 0
          %1109 = vmatprep.subr.bf16.mxu0 0
          %1110 = vmatpush1.bf16.msra.mxu0 0
          %1111 = vmatprep.subr.bf16.mxu0 0
          %1112 = vmatpush1.bf16.msra.mxu0 0
          %1113 = vmatprep.subr.bf16.mxu0 0
          %1114 = vmatpush1.bf16.msra.mxu0 0
          %1115 = vmatprep.subr.bf16.mxu0 0
          %1116 = vmatpush1.bf16.msra.mxu0 0
          %1117 = vmatprep.subr.bf16.mxu0 0
          %1118 = vmatpush1.bf16.msra.mxu0 0
          %1119 = vmatprep.subr.bf16.mxu0 0
          %1120 = vmatpush1.bf16.msra.mxu0 0
          %1121 = vmatprep.subr.bf16.mxu0 0
          %1122 = vmatpush1.bf16.msra.mxu0 0
          %1123 = vmatprep.mubr.bf16.mxu0 0
          %1124 = vmatmul.mubr.bf16.gmra.mrb[0].mxu0 %v1089
          %v1125 = vpop.f32.mrb[0].mxu0
          %v1126 = vadd.f32 0.0, %v1125
          %v1127 = vpop.f32.mrb[0].mxu0
          %v1128 = vpop.f32.mrb[0].mxu0
          %v1129 = vadd.f32 0.0, %v1128
          %v1130 = vpop.f32.mrb[0].mxu0
          %1131 = vdwg.mxu0
          %1132 = vst.msk [vmem:[#allocation3] sm:$0xff] %vm835, %v1126
          %1133 = vst.msk [vmem:[#allocation3 + $0x8] sm:$0xff] %vm835, %v1129
          %1134 = vst.msk [vmem:[#allocation4] sm:$0xff] %vm835, 0.0
          %1135 = vst.msk [vmem:[#allocation4 + $0x8] sm:$0xff] %vm835, 0.0
        $region112: #{gn_block_forward.1} parent=107 // pred_fallthru
          _
        %v1136 = vld [vmem:[%s769] sm:$0xf]
        %v1137 = vld [vmem:[%s769 + $0x4] sm:$0xf]
        %v1138 = vld [vmem:[%s6] sm:$0xf]
        %v1139 = vld [vmem:[%s6 + $0x4] sm:$0xf]
        %v1140 = vld [vmem:[%s6 + $0x8] sm:$0xf]
        %v1141 = vld [vmem:[%s6 + $0xc] sm:$0xf]
        %v1142 = vld [vmem:[%s775] sm:$0xf]
        %v1143 = vld [vmem:[%s775 + $0x4] sm:$0xf]
        %v1144 = vld [vmem:[%s7] sm:$0xf]
        %v1145 = vld [vmem:[%s7 + $0x4] sm:$0xf]
        %v1146 = vld [vmem:[%s7 + $0x8] sm:$0xf]
        %v1147 = vld [vmem:[%s7 + $0xc] sm:$0xf]
        %v1150 = vunpack.c.l.b16 %v1142
        %v1151 = vunpack.c.l.b16 %v1143
        %v1152 = vpack.c.b16 %v1151, %v1150
        %v1157 = vunpack.c.l.b16 %v1144
        %v1158 = vunpack.c.l.b16 %v1145
        %v1159 = vunpack.c.l.b16 %v1146
        %v1160 = vunpack.c.l.b16 %v1147
        %v1161 = vpack.c.b16 %v1158, %v1157
        %v1162 = vpack.c.b16 %v1160, %v1159
        %vm1165 = vcmask 261120
        %v1167 = vsel %vm1165, %v1152, 0
        %1169 = vmatprep.subr.bf16.mxu0 0
        %1170 = vmatpush1.bf16.msra.mxu0 %v1161
        %1171 = vmatprep.subr.bf16.mxu0 0
        %1172 = vmatpush1.bf16.msra.mxu0 %v1162
        %1173 = vmatprep.subr.bf16.mxu0 0
        %1174 = vmatpush1.bf16.msra.mxu0 0
        %1175 = vmatprep.subr.bf16.mxu0 0
        %1176 = vmatpush1.bf16.msra.mxu0 0
        %1177 = vmatprep.subr.bf16.mxu0 0
        %1178 = vmatpush1.bf16.msra.mxu0 0
        %1179 = vmatprep.subr.bf16.mxu0 0
        %1180 = vmatpush1.bf16.msra.mxu0 0
        %1181 = vmatprep.subr.bf16.mxu0 0
        %1182 = vmatpush1.bf16.msra.mxu0 0
        %1183 = vmatprep.subr.bf16.mxu0 0
        %1184 = vmatpush1.bf16.msra.mxu0 0
        %1185 = vmatprep.subr.bf16.mxu0 0
        %1186 = vmatpush1.bf16.msra.mxu0 0
        %1187 = vmatprep.subr.bf16.mxu0 0
        %1188 = vmatpush1.bf16.msra.mxu0 0
        %1189 = vmatprep.subr.bf16.mxu0 0
        %1190 = vmatpush1.bf16.msra.mxu0 0
        %1191 = vmatprep.subr.bf16.mxu0 0
        %1192 = vmatpush1.bf16.msra.mxu0 0
        %1193 = vmatprep.subr.bf16.mxu0 0
        %1194 = vmatpush1.bf16.msra.mxu0 0
        %1195 = vmatprep.subr.bf16.mxu0 0
        %1196 = vmatpush1.bf16.msra.mxu0 0
        %1197 = vmatprep.subr.bf16.mxu0 0
        %1198 = vmatpush1.bf16.msra.mxu0 0
        %1199 = vmatprep.subr.bf16.mxu0 0
        %1200 = vmatpush1.bf16.msra.mxu0 0
        %1201 = vmatprep.mubr.bf16.mxu0 0
        %1202 = vmatmul.mubr.bf16.gmra.mrb[0].mxu0 %v1167
        %v1203 = vpop.f32.mrb[0].mxu0
        %v1204 = vadd.f32 0.0, %v1203
        %v1205 = vpop.f32.mrb[0].mxu0
        %v1206 = vpop.f32.mrb[0].mxu0
        %v1207 = vadd.f32 0.0, %v1206
        %v1208 = vpop.f32.mrb[0].mxu0
        %1209 = vdwg.mxu0
        %v1212 = vunpack.c.l.b16 %v1136
        %v1213 = vunpack.c.l.b16 %v1137
        %v1214 = vpack.c.b16 %v1213, %v1212
        %v1219 = vunpack.c.l.b16 %v1138
        %v1220 = vunpack.c.l.b16 %v1139
        %v1221 = vunpack.c.l.b16 %v1140
        %v1222 = vunpack.c.l.b16 %v1141
        %v1223 = vpack.c.b16 %v1220, %v1219
        %v1224 = vpack.c.b16 %v1222, %v1221
        %v1228 = vsel %vm1165, %v1214, 0
        %1230 = vmatprep.subr.bf16.mxu0 0
        %1231 = vmatpush1.bf16.msra.mxu0 %v1223
        %1232 = vmatprep.subr.bf16.mxu0 0
        %1233 = vmatpush1.bf16.msra.mxu0 %v1224
        %1234 = vmatprep.subr.bf16.mxu0 0
        %1235 = vmatpush1.bf16.msra.mxu0 0
        %1236 = vmatprep.subr.bf16.mxu0 0
        %1237 = vmatpush1.bf16.msra.mxu0 0
        %1238 = vmatprep.subr.bf16.mxu0 0
        %1239 = vmatpush1.bf16.msra.mxu0 0
        %1240 = vmatprep.subr.bf16.mxu0 0
        %1241 = vmatpush1.bf16.msra.mxu0 0
        %1242 = vmatprep.subr.bf16.mxu0 0
        %1243 = vmatpush1.bf16.msra.mxu0 0
        %1244 = vmatprep.subr.bf16.mxu0 0
        %1245 = vmatpush1.bf16.msra.mxu0 0
        %1246 = vmatprep.subr.bf16.mxu0 0
        %1247 = vmatpush1.bf16.msra.mxu0 0
        %1248 = vmatprep.subr.bf16.mxu0 0
        %1249 = vmatpush1.bf16.msra.mxu0 0
        %1250 = vmatprep.subr.bf16.mxu0 0
        %1251 = vmatpush1.bf16.msra.mxu0 0
        %1252 = vmatprep.subr.bf16.mxu0 0
        %1253 = vmatpush1.bf16.msra.mxu0 0
        %1254 = vmatprep.subr.bf16.mxu0 0
        %1255 = vmatpush1.bf16.msra.mxu0 0
        %1256 = vmatprep.subr.bf16.mxu0 0
        %1257 = vmatpush1.bf16.msra.mxu0 0
        %1258 = vmatprep.subr.bf16.mxu0 0
        %1259 = vmatpush1.bf16.msra.mxu0 0
        %1260 = vmatprep.subr.bf16.mxu0 0
        %1261 = vmatpush1.bf16.msra.mxu0 0
        %1262 = vmatprep.mubr.bf16.mxu0 0
        %1263 = vmatmul.mubr.bf16.gmra.mrb[0].mxu0 %v1228
        %v1264 = vpop.f32.mrb[0].mxu0
        %v1265 = vadd.f32 %v1204, %v1264
        %v1266 = vpop.f32.mrb[0].mxu0
        %v1267 = vpop.f32.mrb[0].mxu0
        %v1268 = vadd.f32 %v1207, %v1267
        %v1269 = vpop.f32.mrb[0].mxu0
        %1270 = vdwg.mxu0
        %v1271 = vld [vmem:[%s781] sm:$0xff]
        %v1272 = vld [vmem:[%s781 + $0x8] sm:$0xff]
        %v1273 = vpack.c.bf16 %v1272, %v1271
        %v1274 = vld [vmem:[%s8] sm:$0xf]
        %v1275 = vld [vmem:[%s8 + $0x4] sm:$0xf]
        %v1276 = vld [vmem:[%s8 + $0x8] sm:$0xf]
        %v1277 = vld [vmem:[%s8 + $0xc] sm:$0xf]
        %v1282 = vunpack.c.l.b16 %v1274
        %v1283 = vunpack.c.l.b16 %v1275
        %v1284 = vunpack.c.l.b16 %v1276
        %v1285 = vunpack.c.l.b16 %v1277
        %v1286 = vpack.c.b16 %v1283, %v1282
        %v1287 = vpack.c.b16 %v1285, %v1284
        %v1291 = vsel %vm1165, %v1273, 0
        %1293 = vmatprep.subr.bf16.mxu0 0
        %1294 = vmatpush1.bf16.msra.mxu0 %v1286
        %1295 = vmatprep.subr.bf16.mxu0 0
        %1296 = vmatpush1.bf16.msra.mxu0 %v1287
        %1297 = vmatprep.subr.bf16.mxu0 0
        %1298 = vmatpush1.bf16.msra.mxu0 0
        %1299 = vmatprep.subr.bf16.mxu0 0
        %1300 = vmatpush1.bf16.msra.mxu0 0
        %1301 = vmatprep.subr.bf16.mxu0 0
        %1302 = vmatpush1.bf16.msra.mxu0 0
        %1303 = vmatprep.subr.bf16.mxu0 0
        %1304 = vmatpush1.bf16.msra.mxu0 0
        %1305 = vmatprep.subr.bf16.mxu0 0
        %1306 = vmatpush1.bf16.msra.mxu0 0
        %1307 = vmatprep.subr.bf16.mxu0 0
        %1308 = vmatpush1.bf16.msra.mxu0 0
        %1309 = vmatprep.subr.bf16.mxu0 0
        %1310 = vmatpush1.bf16.msra.mxu0 0
        %1311 = vmatprep.subr.bf16.mxu0 0
        %1312 = vmatpush1.bf16.msra.mxu0 0
        %1313 = vmatprep.subr.bf16.mxu0 0
        %1314 = vmatpush1.bf16.msra.mxu0 0
        %1315 = vmatprep.subr.bf16.mxu0 0
        %1316 = vmatpush1.bf16.msra.mxu0 0
        %1317 = vmatprep.subr.bf16.mxu0 0
        %1318 = vmatpush1.bf16.msra.mxu0 0
        %1319 = vmatprep.subr.bf16.mxu0 0
        %1320 = vmatpush1.bf16.msra.mxu0 0
        %1321 = vmatprep.subr.bf16.mxu0 0
        %1322 = vmatpush1.bf16.msra.mxu0 0
        %1323 = vmatprep.subr.bf16.mxu0 0
        %1324 = vmatpush1.bf16.msra.mxu0 0
        %1325 = vmatprep.mubr.bf16.mxu0 0
        %1326 = vmatmul.mubr.bf16.gmra.mrb[0].mxu0 %v1291
        %v1327 = vpop.f32.mrb[0].mxu0
        %v1328 = vadd.f32 0.0, %v1327
        %v1329 = vpop.f32.mrb[0].mxu0
        %v1330 = vpop.f32.mrb[0].mxu0
        %v1331 = vadd.f32 0.0, %v1330
        %v1332 = vpop.f32.mrb[0].mxu0
        %1333 = vdwg.mxu0
        %v1334 = vadd.f32 %v1265, %v1328
        %v1335 = vadd.f32 %v1268, %v1331
        %s1336 = smul.u32 %s36, 16
        %p1337 = scmp.lt.s32.totalorder %s1336, 16
        %s1338 = scalar_select %p1337, %s1336, 16
        %v1339 = vld [vmem:[%s787] sm:$0xff]
        %v1340 = vld [vmem:[%s787 + $0x8] sm:$0xff]
        %1342 = vset.pattern.permute.xlu0 0
        %1343 = vperm.xlu0 %1342, %v1339
        %v1344 = vpop.permute.xlu0 %1343
        %1347 = vset.pattern.permute.xlu0 0
        %1348 = vperm.xlu0 %1347, %v1340
        %v1349 = vpop.permute.xlu0 %1348
        %v1351 = vmul.f32 %v1344, %v1334
        %v1352 = vmul.f32 %v1349, %v1335
        %s1353 = scalar_lea.vmem [#allocation2], %s1338
        %v1354 = vld [vmem:[%s1353] sm:$0xff]
        %v1355 = vld [vmem:[%s1353 + $0x8] sm:$0xff]
        %v1356 = vadd.f32 %v1351, %v1354
        %v1357 = vadd.f32 %v1352, %v1355
        %v1358 = vld [vmem:[%s9] sm:$0x1]
        %v1360 = vlaneseq
        %v1361 = vshrl.u32 %v1360, 7
        %v1362 = vsub.s32 0, %v1361
        %v1363 = vrot.slane %v1358, %v1362
        %v1365 = vadd.f32 %v1356, %v1363
        %v1366 = vadd.f32 %v1357, %v1363
        %v1367 = vmax.f32 %v1365, 0.0
        %v1368 = vmax.f32 %v1366, 0.0
        %v1369 = vpack.c.bf16 %v1368, %v1367
        %v1370 = vld [vmem:[%s10] sm:$0xf]
        %v1371 = vld [vmem:[%s10 + $0x4] sm:$0xf]
        %v1372 = vld [vmem:[%s10 + $0x8] sm:$0xf]
        %v1373 = vld [vmem:[%s10 + $0xc] sm:$0xf]
        %v1374 = vld [vmem:[%s11] sm:$0x1]
        %v1376 = vlaneseq
        %v1377 = vshrl.u32 %v1376, 7
        %v1378 = vsub.s32 0, %v1377
        %v1379 = vrot.slane %v1374, %v1378
        %v1385 = vunpack.c.l.b16 %v1370
        %v1386 = vunpack.c.l.b16 %v1371
        %v1387 = vunpack.c.l.b16 %v1372
        %v1388 = vunpack.c.l.b16 %v1373
        %v1389 = vpack.c.b16 %v1386, %v1385
        %v1390 = vpack.c.b16 %v1388, %v1387
        %v1394 = vsel %vm1165, %v1369, 0
        %1396 = vmatprep.subr.bf16.mxu0 0
        %1397 = vmatpush1.bf16.msra.mxu0 %v1389
        %1398 = vmatprep.subr.bf16.mxu0 0
        %1399 = vmatpush1.bf16.msra.mxu0 %v1390
        %1400 = vmatprep.subr.bf16.mxu0 0
        %1401 = vmatpush1.bf16.msra.mxu0 0
        %1402 = vmatprep.subr.bf16.mxu0 0
        %1403 = vmatpush1.bf16.msra.mxu0 0
        %1404 = vmatprep.subr.bf16.mxu0 0
        %1405 = vmatpush1.bf16.msra.mxu0 0
        %1406 = vmatprep.subr.bf16.mxu0 0
        %1407 = vmatpush1.bf16.msra.mxu0 0
        %1408 = vmatprep.subr.bf16.mxu0 0
        %1409 = vmatpush1.bf16.msra.mxu0 0
        %1410 = vmatprep.subr.bf16.mxu0 0
        %1411 = vmatpush1.bf16.msra.mxu0 0
        %1412 = vmatprep.subr.bf16.mxu0 0
        %1413 = vmatpush1.bf16.msra.mxu0 0
        %1414 = vmatprep.subr.bf16.mxu0 0
        %1415 = vmatpush1.bf16.msra.mxu0 0
        %1416 = vmatprep.subr.bf16.mxu0 0
        %1417 = vmatpush1.bf16.msra.mxu0 0
        %1418 = vmatprep.subr.bf16.mxu0 0
        %1419 = vmatpush1.bf16.msra.mxu0 0
        %1420 = vmatprep.subr.bf16.mxu0 0
        %1421 = vmatpush1.bf16.msra.mxu0 0
        %1422 = vmatprep.subr.bf16.mxu0 0
        %1423 = vmatpush1.bf16.msra.mxu0 0
        %1424 = vmatprep.subr.bf16.mxu0 0
        %1425 = vmatpush1.bf16.msra.mxu0 0
        %1426 = vmatprep.subr.bf16.mxu0 0
        %1427 = vmatpush1.bf16.msra.mxu0 0
        %1428 = vmatprep.mubr.bf16.mxu0 0
        %1429 = vmatmul.mubr.bf16.gmra.mrb[0].mxu0 %v1394
        %v1430 = vpop.f32.mrb[0].mxu0
        %v1431 = vadd.f32 %v1379, %v1430
        %v1432 = vpop.f32.mrb[0].mxu0
        %v1433 = vpop.f32.mrb[0].mxu0
        %v1434 = vadd.f32 %v1379, %v1433
        %v1435 = vpop.f32.mrb[0].mxu0
        %1436 = vdwg.mxu0
        %v1437 = vadd.f32 %v1271, %v1431
        %v1438 = vadd.f32 %v1272, %v1434
        %1439 = vst.msk [vmem:[%s799] sm:$0xff] %vm1165, %v1437
        %1440 = vst.msk [vmem:[%s799 + $0x8] sm:$0xff] %vm1165, %v1438
        %v1441 = vld [vmem:[#allocation4] sm:$0xff]
        %v1442 = vld [vmem:[#allocation4 + $0x8] sm:$0xff]
        %v1443 = vld [vmem:[%s793] sm:$0xf]
        %v1444 = vld [vmem:[%s793 + $0x4] sm:$0xf]
        %v1445 = vpack.c.bf16 %v1434, %v1431
        %v1448 = vunpack.c.l.b16 %v1443
        %v1449 = vunpack.c.l.b16 %v1444
        %v1450 = vpack.c.b16 %v1449, %v1448
        %1452 = vxpose.xlu0.c.b16.start [1/8] %v1450, 128
        %1453 = vxpose.xlu0.c.b16.cont [2/8] 0, 128
        %1454 = vxpose.xlu0.c.b16.cont [3/8] 0, 128
        %1455 = vxpose.xlu0.c.b16.cont [4/8] 0, 128
        %1456 = vxpose.xlu0.c.b16.cont [5/8] 0, 128
        %1457 = vxpose.xlu0.c.b16.cont [6/8] 0, 128
        %1458 = vxpose.xlu0.c.b16.cont [7/8] 0, 128
        %1459 = vxpose.xlu0.c.b16.end [8/8] 0, 128
        %v1460 = vpop.trf.xlu0
        %v1461 = vpop.trf.xlu0
        %v1462 = vpop.trf.xlu0
        %v1463 = vpop.trf.xlu0
        %v1464 = vpop.trf.xlu0
        %v1465 = vpop.trf.xlu0
        %v1466 = vpop.trf.xlu0
        %v1467 = vpop.trf.xlu0
        %vm1468 = vcmask 130048
        %v1470 = vsel %vm1468, %v1460, 0
        %1472 = vmatprep.subr.bf16.mxu0 0
        %1473 = vmatpush1.bf16.msra.mxu0 %v1445
        %1474 = vmatprep.subr.bf16.mxu0 0
        %1475 = vmatpush1.bf16.msra.mxu0 0
        %1476 = vmatprep.subr.bf16.mxu0 0
        %1477 = vmatpush1.bf16.msra.mxu0 0
        %1478 = vmatprep.subr.bf16.mxu0 0
        %1479 = vmatpush1.bf16.msra.mxu0 0
        %1480 = vmatprep.subr.bf16.mxu0 0
        %1481 = vmatpush1.bf16.msra.mxu0 0
        %1482 = vmatprep.subr.bf16.mxu0 0
        %1483 = vmatpush1.bf16.msra.mxu0 0
        %1484 = vmatprep.subr.bf16.mxu0 0
        %1485 = vmatpush1.bf16.msra.mxu0 0
        %1486 = vmatprep.subr.bf16.mxu0 0
        %1487 = vmatpush1.bf16.msra.mxu0 0
        %1488 = vmatprep.subr.bf16.mxu0 0
        %1489 = vmatpush1.bf16.msra.mxu0 0
        %1490 = vmatprep.subr.bf16.mxu0 0
        %1491 = vmatpush1.bf16.msra.mxu0 0
        %1492 = vmatprep.subr.bf16.mxu0 0
        %1493 = vmatpush1.bf16.msra.mxu0 0
        %1494 = vmatprep.subr.bf16.mxu0 0
        %1495 = vmatpush1.bf16.msra.mxu0 0
        %1496 = vmatprep.subr.bf16.mxu0 0
        %1497 = vmatpush1.bf16.msra.mxu0 0
        %1498 = vmatprep.subr.bf16.mxu0 0
        %1499 = vmatpush1.bf16.msra.mxu0 0
        %1500 = vmatprep.subr.bf16.mxu0 0
        %1501 = vmatpush1.bf16.msra.mxu0 0
        %1502 = vmatprep.subr.bf16.mxu0 0
        %1503 = vmatpush1.bf16.msra.mxu0 0
        %1504 = vmatprep.mubr.bf16.mxu0 0
        %1505 = vmatmul.mubr.bf16.gmra.mrb[0].mxu0 %v1470
        %v1506 = vpop.f32.mrb[0].mxu0
        %v1507 = vadd.f32 0.0, %v1506
        %v1508 = vpop.f32.mrb[0].mxu0
        %v1509 = vpop.f32.mrb[0].mxu0
        %v1510 = vadd.f32 0.0, %v1509
        %v1511 = vpop.f32.mrb[0].mxu0
        %1512 = vdwg.mxu0
        %v1513 = vadd.f32 %v1441, %v1507
        %v1514 = vadd.f32 %v1442, %v1510
        %1515 = vst.msk [vmem:[#allocation4] sm:$0xff] %vm1165, %v1513
        %1516 = vst.msk [vmem:[#allocation4 + $0x8] sm:$0xff] %vm1165, %v1514
        %p1517 = scmp.eq.s32.totalorder %s36, 2
        // Predicated region
        $region113: #{gn_block_forward.1} parent=107 // pred_check
          %p1518 = pneg %p1517
        $region114: #{gn_block_forward.1} parent=107 // pred_check_branch
          %1520 = sbr.rel (%p1518) target = $region116
        $region115: #{gn_block_forward.1} parent=107 // pred_region
          %v1521 = vld [vmem:[#allocation3] sm:$0xff]
          %v1522 = vld [vmem:[#allocation3 + $0x8] sm:$0xff]
          %v1523 = vld [vmem:[#allocation4] sm:$0xff]
          %v1524 = vld [vmem:[#allocation4 + $0x8] sm:$0xff]
          %v1525 = vpack.c.bf16 %v1524, %v1523
          %v1526 = vld [vmem:[%s13] sm:$0xf]
          %v1527 = vld [vmem:[%s13 + $0x4] sm:$0xf]
          %v1528 = vld [vmem:[%s13 + $0x8] sm:$0xf]
          %v1529 = vld [vmem:[%s13 + $0xc] sm:$0xf]
          %v1534 = vunpack.c.l.b16 %v1526
          %v1535 = vunpack.c.l.b16 %v1527
          %v1536 = vunpack.c.l.b16 %v1528
          %v1537 = vunpack.c.l.b16 %v1529
          %v1538 = vpack.c.b16 %v1535, %v1534
          %v1539 = vpack.c.b16 %v1537, %v1536
          %v1543 = vsel %vm1165, %v1525, 0
          %1545 = vmatprep.subr.bf16.mxu0 0
          %1546 = vmatpush1.bf16.msra.mxu0 %v1538
          %1547 = vmatprep.subr.bf16.mxu0 0
          %1548 = vmatpush1.bf16.msra.mxu0 %v1539
          %1549 = vmatprep.subr.bf16.mxu0 0
          %1550 = vmatpush1.bf16.msra.mxu0 0
          %1551 = vmatprep.subr.bf16.mxu0 0
          %1552 = vmatpush1.bf16.msra.mxu0 0
          %1553 = vmatprep.subr.bf16.mxu0 0
          %1554 = vmatpush1.bf16.msra.mxu0 0
          %1555 = vmatprep.subr.bf16.mxu0 0
          %1556 = vmatpush1.bf16.msra.mxu0 0
          %1557 = vmatprep.subr.bf16.mxu0 0
          %1558 = vmatpush1.bf16.msra.mxu0 0
          %1559 = vmatprep.subr.bf16.mxu0 0
          %1560 = vmatpush1.bf16.msra.mxu0 0
          %1561 = vmatprep.subr.bf16.mxu0 0
          %1562 = vmatpush1.bf16.msra.mxu0 0
          %1563 = vmatprep.subr.bf16.mxu0 0
          %1564 = vmatpush1.bf16.msra.mxu0 0
          %1565 = vmatprep.subr.bf16.mxu0 0
          %1566 = vmatpush1.bf16.msra.mxu0 0
          %1567 = vmatprep.subr.bf16.mxu0 0
          %1568 = vmatpush1.bf16.msra.mxu0 0
          %1569 = vmatprep.subr.bf16.mxu0 0
          %1570 = vmatpush1.bf16.msra.mxu0 0
          %1571 = vmatprep.subr.bf16.mxu0 0
          %1572 = vmatpush1.bf16.msra.mxu0 0
          %1573 = vmatprep.subr.bf16.mxu0 0
          %1574 = vmatpush1.bf16.msra.mxu0 0
          %1575 = vmatprep.subr.bf16.mxu0 0
          %1576 = vmatpush1.bf16.msra.mxu0 0
          %1577 = vmatprep.mubr.bf16.mxu0 0
          %1578 = vmatmul.mubr.bf16.gmra.mrb[0].mxu0 %v1543
          %v1579 = vpop.f32.mrb[0].mxu0
          %v1580 = vadd.f32 0.0, %v1579
          %v1581 = vpop.f32.mrb[0].mxu0
          %v1582 = vpop.f32.mrb[0].mxu0
          %v1583 = vadd.f32 0.0, %v1582
          %v1584 = vpop.f32.mrb[0].mxu0
          %1585 = vdwg.mxu0
          %v1586 = vadd.f32 %v1521, %v1580
          %v1587 = vadd.f32 %v1522, %v1583
          %v1588 = vld [vmem:[%s4] sm:$0xf]
          %v1589 = vld [vmem:[%s4 + $0x4] sm:$0xf]
          %v1590 = vpack.c.bf16 %v1587, %v1586
          %v1591 = vld [vmem:[%s14] sm:$0x1]
          %v1593 = vlaneseq
          %v1594 = vshrl.u32 %v1593, 7
          %v1595 = vsub.s32 0, %v1594
          %v1596 = vrot.slane %v1591, %v1595
          %v1600 = vunpack.c.l.b16 %v1588
          %v1601 = vunpack.c.l.b16 %v1589
          %v1602 = vpack.c.b16 %v1601, %v1600
          %v1604 = vsel %vm1468, %v1602, 0
          %1606 = vmatprep.subr.bf16.mxu0 0
          %1607 = vmatpush1.bf16.msra.mxu0 %v1590
          %1608 = vmatprep.subr.bf16.mxu0 0
          %1609 = vmatpush1.bf16.msra.mxu0 0
          %1610 = vmatprep.subr.bf16.mxu0 0
          %1611 = vmatpush1.bf16.msra.mxu0 0
          %1612 = vmatprep.subr.bf16.mxu0 0
          %1613 = vmatpush1.bf16.msra.mxu0 0
          %1614 = vmatprep.subr.bf16.mxu0 0
          %1615 = vmatpush1.bf16.msra.mxu0 0
          %1616 = vmatprep.subr.bf16.mxu0 0
          %1617 = vmatpush1.bf16.msra.mxu0 0
          %1618 = vmatprep.subr.bf16.mxu0 0
          %1619 = vmatpush1.bf16.msra.mxu0 0
          %1620 = vmatprep.subr.bf16.mxu0 0
          %1621 = vmatpush1.bf16.msra.mxu0 0
          %1622 = vmatprep.subr.bf16.mxu0 0
          %1623 = vmatpush1.bf16.msra.mxu0 0
          %1624 = vmatprep.subr.bf16.mxu0 0
          %1625 = vmatpush1.bf16.msra.mxu0 0
          %1626 = vmatprep.subr.bf16.mxu0 0
          %1627 = vmatpush1.bf16.msra.mxu0 0
          %1628 = vmatprep.subr.bf16.mxu0 0
          %1629 = vmatpush1.bf16.msra.mxu0 0
          %1630 = vmatprep.subr.bf16.mxu0 0
          %1631 = vmatpush1.bf16.msra.mxu0 0
          %1632 = vmatprep.subr.bf16.mxu0 0
          %1633 = vmatpush1.bf16.msra.mxu0 0
          %1634 = vmatprep.subr.bf16.mxu0 0
          %1635 = vmatpush1.bf16.msra.mxu0 0
          %1636 = vmatprep.subr.bf16.mxu0 0
          %1637 = vmatpush1.bf16.msra.mxu0 0
          %1638 = vmatprep.mubr.bf16.mxu0 0
          %1639 = vmatmul.mubr.bf16.gmra.mrb[0].mxu0 %v1604
          %v1640 = vpop.f32.mrb[0].mxu0
          %v1641 = vadd.f32 %v1596, %v1640
          %v1642 = vpop.f32.mrb[0].mxu0
          %v1643 = vpop.f32.mrb[0].mxu0
          %v1644 = vadd.f32 %v1596, %v1643
          %v1645 = vpop.f32.mrb[0].mxu0
          %1646 = vdwg.mxu0
          %v1647 = vmax.f32 %v1641, 0.0
          %v1648 = vmax.f32 %v1644, 0.0
          %v1649 = vpack.c.bf16 %v1648, %v1647
          %v1650 = vld [vmem:[%s15] sm:$0xf]
          %v1651 = vld [vmem:[%s15 + $0x4] sm:$0xf]
          %v1652 = vld [vmem:[%s15 + $0x8] sm:$0xf]
          %v1653 = vld [vmem:[%s15 + $0xc] sm:$0xf]
          %v1654 = vld [vmem:[%s16] sm:$0x1]
          %v1656 = vlaneseq
          %v1657 = vshrl.u32 %v1656, 7
          %v1658 = vsub.s32 0, %v1657
          %v1659 = vrot.slane %v1654, %v1658
          %v1665 = vunpack.c.l.b16 %v1650
          %v1666 = vunpack.c.l.b16 %v1651
          %v1667 = vunpack.c.l.b16 %v1652
          %v1668 = vunpack.c.l.b16 %v1653
          %v1669 = vpack.c.b16 %v1666, %v1665
          %v1670 = vpack.c.b16 %v1668, %v1667
          %v1674 = vsel %vm1165, %v1649, 0
          %1676 = vmatprep.subr.bf16.mxu0 0
          %1677 = vmatpush1.bf16.msra.mxu0 %v1669
          %1678 = vmatprep.subr.bf16.mxu0 0
          %1679 = vmatpush1.bf16.msra.mxu0 %v1670
          %1680 = vmatprep.subr.bf16.mxu0 0
          %1681 = vmatpush1.bf16.msra.mxu0 0
          %1682 = vmatprep.subr.bf16.mxu0 0
          %1683 = vmatpush1.bf16.msra.mxu0 0
          %1684 = vmatprep.subr.bf16.mxu0 0
          %1685 = vmatpush1.bf16.msra.mxu0 0
          %1686 = vmatprep.subr.bf16.mxu0 0
          %1687 = vmatpush1.bf16.msra.mxu0 0
          %1688 = vmatprep.subr.bf16.mxu0 0
          %1689 = vmatpush1.bf16.msra.mxu0 0
          %1690 = vmatprep.subr.bf16.mxu0 0
          %1691 = vmatpush1.bf16.msra.mxu0 0
          %1692 = vmatprep.subr.bf16.mxu0 0
          %1693 = vmatpush1.bf16.msra.mxu0 0
          %1694 = vmatprep.subr.bf16.mxu0 0
          %1695 = vmatpush1.bf16.msra.mxu0 0
          %1696 = vmatprep.subr.bf16.mxu0 0
          %1697 = vmatpush1.bf16.msra.mxu0 0
          %1698 = vmatprep.subr.bf16.mxu0 0
          %1699 = vmatpush1.bf16.msra.mxu0 0
          %1700 = vmatprep.subr.bf16.mxu0 0
          %1701 = vmatpush1.bf16.msra.mxu0 0
          %1702 = vmatprep.subr.bf16.mxu0 0
          %1703 = vmatpush1.bf16.msra.mxu0 0
          %1704 = vmatprep.subr.bf16.mxu0 0
          %1705 = vmatpush1.bf16.msra.mxu0 0
          %1706 = vmatprep.subr.bf16.mxu0 0
          %1707 = vmatpush1.bf16.msra.mxu0 0
          %1708 = vmatprep.mubr.bf16.mxu0 0
          %1709 = vmatmul.mubr.bf16.gmra.mrb[0].mxu0 %v1674
          %v1710 = vpop.f32.mrb[0].mxu0
          %v1711 = vadd.f32 %v1659, %v1710
          %v1712 = vpop.f32.mrb[0].mxu0
          %v1713 = vpop.f32.mrb[0].mxu0
          %v1714 = vadd.f32 %v1659, %v1713
          %v1715 = vpop.f32.mrb[0].mxu0
          %1716 = vdwg.mxu0
          %v1717 = vld [vmem:[%s3] sm:$0xff]
          %v1718 = vld [vmem:[%s3 + $0x8] sm:$0xff]
          %v1719 = vadd.f32 %v1717, %v1711
          %v1720 = vadd.f32 %v1718, %v1714
          %1721 = vst.msk [vmem:[#allocation5] sm:$0xff] %vm1165, %v1719
          %1722 = vst.msk [vmem:[#allocation5 + $0x8] sm:$0xff] %vm1165, %v1720
        $region116: #{gn_block_forward.1} parent=107 // pred_fallthru
          _
        %s1723 = smul.u32 2, %s36
        %p1724 = scmp.lt.s32.totalorder %s1723, 5
        %s1725 = scalar_select %p1724, %s1723, 5
        %s1726 = smul.addr %s1725, 8
        %s1727 = scalar_lea.vmem %s22, %s1726
        // Predicated region
        $region117: #{gn_block_forward.1} parent=107 // pred_check
          %p1728 = pneg %p541
        $region118: #{gn_block_forward.1} parent=107 // pred_check_branch
          %1730 = sbr.rel (%p1728) target = $region120
        $region119: #{gn_block_forward.1} parent=107 // pred_region
          %s1731 = smul.u32 2, %s36
        $region120: #{gn_block_forward.1} parent=107 // pred_fallthru
          _
        // Predicated region
        $region121: #{gn_block_forward.1} parent=107 // pred_check
          %p1732 = pneg %p562
        $region122: #{gn_block_forward.1} parent=107 // pred_check_branch
          %1734 = sbr.rel (%p1732) target = $region124
        $region123: #{gn_block_forward.1} parent=107 // pred_region
          %s1736 = ssub.s32 256, 256
          %1737 = vsyncadd [#allocation6], %s1736
          %s1738 = sshll.u32 [#allocation5], 4
          %s1739 = int_to_ptr.vmem [resolvable:$true] %s1738
          %1744 = dma.vmem_to_hbm [thread:$0]  %s1739, 256, %s23, [#allocation6], 128, 128, 8
        $region124: #{gn_block_forward.1} parent=107 // pred_fallthru
          _
        // Predicated region
        $region125: #{gn_block_forward.1} parent=107 // pred_check
          %p1745 = pneg %p562
        $region126: #{gn_block_forward.1} parent=107 // pred_check_branch
          %1747 = sbr.rel (%p1745) target = $region128
        $region127: #{gn_block_forward.1} parent=107 // pred_region
          %1748 = dma.done [#allocation6], 256
        $region128: #{gn_block_forward.1} parent=107 // pred_fallthru
          _
      $region108: #{gn_block_forward.1} parent=5 // pred_fallthru
        _
      %p1749 = scmp.le.s32.totalorder 2, %s31
      // Predicated region
      $region129: #{gn_block_forward.1} parent=5 // pred_check
        %p1750 = pneg %p1749
      $region130: #{gn_block_forward.1} parent=5 // pred_check_branch
        %1752 = sbr.rel (%p1750) target = $region132
      $region131: #{gn_block_forward.1} parent=5 // pred_region
        %s1753 = ssub.s32 %s31, 2
        // Predicated region
        $region133: #{gn_block_forward.1} parent=131 // pred_check
          %p1754 = pneg %p547
        $region134: #{gn_block_forward.1} parent=131 // pred_check_branch
          %1756 = sbr.rel (%p1754) target = $region136
        $region135: #{gn_block_forward.1} parent=131 // pred_region
          %s1757 = smul.u32 2, %s37
          %p1758 = scmp.lt.s32.totalorder %s1757, 5
          %s1759 = scalar_select %p1758, %s1757, 5
          %s1760 = smul.addr %s1759, 8
          %s1761 = scalar_lea.vmem %s22, %s1760
        $region136: #{gn_block_forward.1} parent=131 // pred_fallthru
          _
      $region132: #{gn_block_forward.1} parent=5 // pred_fallthru
        _
    $region6: #{gn_block_forward.1} parent=1 // loop_footer
      %s35 = sadd.s32 1, %s31
    $region7: #{gn_block_forward.1} parent=1 // loop_footer_branch
      %30 = sbr.rel target = $region3
    $region8: #{gn_block_forward.1} parent=1 // loop_exit
      _
    %1762 = vsyncpa [#allocation6], 1
    %s1763 = scalar_lea.sflag [#allocation6], 1
    %1764 = vsyncpa %s1763, 1

</llo_original>
